<compile_context>
chip_gen: v5e
topology: v5e:2x2
jax: 0.10.0
libtpu: 0.0.40
codegen_flags: <defaults>
</compile_context>

<pallas_src>
import jax
import jax.numpy as jnp
from jax import lax
from jax.experimental import pallas as pl
from jax.experimental.pallas import tpu as pltpu

F32_EPS = 1.1920929e-07        # torch.finfo(torch.float32).eps
REG_WEIGHT = 5.0               # cfg.MODEL.FCOS.REG_WEIGHT (AutoAssign default)
FOCAL_ALPHA = 0.25             # cfg.MODEL.FCOS.FOCAL_LOSS_ALPHA
FOCAL_GAMMA = 2.0              # cfg.MODEL.FCOS.FOCAL_LOSS_GAMMA (== 2, static)
# iou_loss_type = "giou" (AutoAssign default config)

_BIG = 1e30                    # finite sentinel for masked min/max


def _positive_kernel(clsrow_ref, obj_ref, predd_ref, loc_ref, stride_ref,
                     pergt_ref, pos_ref, normsum_ref, negcorr_ref):
    """Per-image positive bag loss + fused box-prob normalize + neg-loss delta.

    Layout: anchor axis A is lane-dense (last dim); gt index G on sublanes.
    """
    cls_rows = clsrow_ref[0]         # (G, A)  cls logits gathered at gt labels
    obj_logits = obj_ref[0]          # (1, A)
    pred_d = predd_ref[0]            # (4, A)  predicted ltrb deltas
    loc = loc_ref[...]               # (2, A)  (x, y)
    stride = stride_ref[...]         # (1, A)
    pergt = pergt_ref[0]             # (G, 8+G): box(4) | mu(2) | sigma(2) | upper_same(G)

    G = cls_rows.shape[0]

    obj_prob = jax.nn.sigmoid(obj_logits)                 # (1, A)
    composed = jax.nn.sigmoid(cls_rows) * obj_prob        # (G, A)

    gx0 = pergt[:, 0:1]
    gy0 = pergt[:, 1:2]
    gx1 = pergt[:, 2:3]
    gy1 = pergt[:, 3:4]
    mux = pergt[:, 4:5]
    muy = pergt[:, 5:6]
    sx = pergt[:, 6:7]
    sy = pergt[:, 7:8]
    upper_same = pergt[:, 8:8 + G]                        # (G, G)

    loc_x = loc[0:1, :]
    loc_y = loc[1:2, :]

    # target shift deltas (ltrb), (G, A)
    l_t = loc_x - gx0
    t_t = loc_y - gy0
    r_t = gx1 - loc_x
    b_t = gy1 - loc_y
    min_delta = jnp.minimum(jnp.minimum(l_t, t_t), jnp.minimum(r_t, b_t))
    is_in = (min_delta > 0).astype(jnp.float32)           # (G, A)

    # predicted boxes via apply_deltas, (1, A) each coord
    pl_ = pred_d[0:1, :]
    pt_ = pred_d[1:2, :]
    pr_ = pred_d[2:3, :]
    pb_ = pred_d[3:4, :]
    px0 = loc_x - pl_
    py0 = loc_y - pt_
    px1 = loc_x + pr_
    py1 = loc_y + pb_

    # pairwise IoU(gt_boxes, predicted_boxes) -> (G, A), max over gt -> (1, A)
    area_gt = (gx1 - gx0) * (gy1 - gy0)
    area_pr = (px1 - px0) * (py1 - py0)
    iw = jnp.maximum(jnp.minimum(gx1, px1) - jnp.maximum(gx0, px0), 0.0)
    ih = jnp.maximum(jnp.minimum(gy1, py1) - jnp.maximum(gy0, py0), 0.0)
    inter = iw * ih
    iou = jnp.where(inter > 0, inter / (area_gt + area_pr - inter), 0.0)
    iou_max = jnp.max(iou, axis=0, keepdims=True)         # (1, A)

    # fused 2-D Gaussian (single exp instead of nx*ny)
    gcx = (gx0 + gx1) * 0.5
    gcy = (gy0 + gy1) * 0.5
    dx = (loc_x - gcx) / stride
    dy = (loc_y - gcy) / stride
    normal_probs = jnp.exp(-((dx - mux) ** 2) / (2.0 * sx * sx)
                           - ((dy - muy) ** 2) / (2.0 * sy * sy))   # (G, A)

    # GIoU loss in ltrb mode, pred broadcast over G
    in_area = jnp.maximum(pr_ + pl_, 0.0) * jnp.maximum(pb_ + pt_, 0.0)
    tg_area = jnp.maximum(r_t + l_t, 0.0) * jnp.maximum(b_t + t_t, 0.0)
    wi = jnp.maximum(jnp.minimum(pr_, r_t) + jnp.minimum(pl_, l_t), 0.0)
    hi = jnp.maximum(jnp.minimum(pb_, b_t) + jnp.minimum(pt_, t_t), 0.0)
    ai = wi * hi
    au = tg_area + in_area - ai
    ious = ai * pl.reciprocal(jnp.maximum(au, F32_EPS), approx=True)
    gw = jnp.maximum(pr_, r_t) + jnp.maximum(pl_, l_t)
    gh = jnp.maximum(pb_, b_t) + jnp.maximum(pt_, t_t)
    ac = gw * gh
    gious = ious - (ac - au) * pl.reciprocal(jnp.maximum(ac, F32_EPS), approx=True)
    loss_box_reg = (1.0 - gious) * REG_WEIGHT
    pred_reg_probs = jnp.exp(-loss_box_reg)               # (G, A)

    # positive_bag_loss
    logits = composed * pred_reg_probs                    # (G, A)
    weight = jnp.exp(3.0 * logits) * normal_probs * is_in
    wsum = jnp.sum(weight, axis=1, keepdims=True)
    w = weight * pl.reciprocal(jnp.maximum(wsum, 1e-12), approx=True)
    bag_prob = jnp.sum(w * logits, axis=1, keepdims=True)          # (G, 1)
    pos = -jnp.maximum(jnp.log(bag_prob), -100.0)                  # BCE vs ones
    pos_ref[...] = pos[None]                                       # (1, G, 1)

    normsum_ref[...] = jnp.sum(normal_probs * is_in, keepdims=True)[None]

    # ---- fused box-prob normalize + negative-bag-loss correction ----------
    # box_prob = 1 / clamp(1 - iou_max, 1e-12), normalized per-gt over in-box
    # anchors (torch `normalize`), then scattered to class column labels[g]
    # with "later gt wins" on duplicates; here expressed as a correction term
    # to the background negative loss computed in _negative_bg_kernel.
    box_p = pl.reciprocal(jnp.maximum(1.0 - iou_max, 1e-12), approx=True)   # (1, A)
    vmin = jnp.min(jnp.where(is_in > 0, box_p, _BIG), axis=1, keepdims=True)
    vmax = jnp.max(jnp.where(is_in > 0, box_p, -_BIG), axis=1, keepdims=True)
    bp_norm = (box_p - vmin + 1e-12) / (vmax - vmin + 1e-12)                # (G, A)
    bp_norm = jnp.where(is_in > 0, bp_norm, 0.0)

    # "later gt wins": gt g is the winner for anchor a iff no later gt with the
    # same label also contains a.  conflict = upper_same @ is_in.
    conflict = lax.dot_general(upper_same, is_in, (((1,), (0,)), ((), ())),
                               preferred_element_type=jnp.float32)          # (G, A)
    last_mask = is_in * (conflict <= 0.0).astype(jnp.float32)

    def _gfun(x):                      # x^2 * BCE(x, 0) with torch log clamp
        return x * x * (-jnp.maximum(jnp.log(1.0 - x), -100.0))

    q = composed                                                            # (G, A)
    corr = (_gfun(q * (1.0 - bp_norm)) - _gfun(q)) * last_mask
    negcorr_ref[...] = jnp.sum(corr, keepdims=True)[None]                   # (1, 1, 1)


def _negative_bg_kernel(cls_ref, obj_ref, out_ref):
    """Background term of the negative bag loss: sum_{a,k} g(cls*obj).

    Grid = (image, anchor_tile); accumulates over anchor tiles into (1,1,1).
    """
    @pl.when(pl.program_id(1) == 0)
    def _():
        out_ref[...] = jnp.zeros_like(out_ref)

    p = jax.nn.sigmoid(cls_ref[0]) * jax.nn.sigmoid(obj_ref[0])   # (K, TA)
    bce = -jnp.maximum(jnp.log(1.0 - p), -100.0)                  # BCE vs zeros
    neg = (p * p) * bce                                           # gamma == 2
    out_ref[...] = out_ref[...] + jnp.sum(neg, keepdims=True)[None]


def _anchor_tile(A):
    for ta in (2048, 1024, 512, 256, 128):
        if A % ta == 0:
            return ta
    return A


def autoassign_losses(cls_logits, delta_pred, obj_logits, locations, strides,
                      gt_boxes, gt_labels, mu, sigma):
    """AutoAssign.losses() for a fixed number of gt boxes per image."""
    N, A, K = cls_logits.shape
    G = gt_boxes.shape[1]

    # ---- plain-JAX glue: layout transposes + tiny gathers ------------------
    cls_ka = jnp.transpose(cls_logits, (0, 2, 1))                 # (N, K, A) lane-dense
    cls_rows = jax.vmap(lambda c, l: c[l])(cls_ka, gt_labels)     # (N, G, A)
    obj_row = jnp.transpose(obj_logits, (0, 2, 1))                # (N, 1, A)
    predd_t = jnp.transpose(delta_pred, (0, 2, 1))                # (N, 4, A)
    loc_t = locations.T                                           # (2, A)
    stride_row = strides.reshape(1, A)                            # (1, A)

    mu_g = mu[gt_labels]                                          # (N, G, 2)
    sigma_g = sigma[gt_labels]                                    # (N, G, 2)
    # duplicate-label upper-triangular matrix: [g, g'] = 1 iff label equal, g' > g
    same = (gt_labels[:, :, None] == gt_labels[:, None, :]).astype(jnp.float32)
    upper_same = same * jnp.triu(jnp.ones((G, G), jnp.float32), k=1)        # (N, G, G)
    pergt = jnp.concatenate([gt_boxes, mu_g, sigma_g, upper_same], axis=-1)  # (N, G, 8+G)
    PW = 8 + G

    # ---- positive bag loss + box-prob normalize + negative correction -----
    pos_call = pl.pallas_call(
        _positive_kernel,
        grid=(N,),
        in_specs=[
            pl.BlockSpec((1, G, A), lambda i: (i, 0, 0)),
            pl.BlockSpec((1, 1, A), lambda i: (i, 0, 0)),
            pl.BlockSpec((1, 4, A), lambda i: (i, 0, 0)),
            pl.BlockSpec((2, A), lambda i: (0, 0)),
            pl.BlockSpec((1, A), lambda i: (0, 0)),
            pl.BlockSpec((1, G, PW), lambda i: (i, 0, 0)),
        ],
        out_specs=[
            pl.BlockSpec((1, G, 1), lambda i: (i, 0, 0)),
            pl.BlockSpec((1, 1, 1), lambda i: (i, 0, 0)),
            pl.BlockSpec((1, 1, 1), lambda i: (i, 0, 0)),
        ],
        out_shape=[
            jax.ShapeDtypeStruct((N, G, 1), jnp.float32),   # per-gt positive loss
            jax.ShapeDtypeStruct((N, 1, 1), jnp.float32),   # sum normal_probs[fg]
            jax.ShapeDtypeStruct((N, 1, 1), jnp.float32),   # negative-loss correction
        ],
        compiler_params=pltpu.CompilerParams(
            dimension_semantics=("parallel",)),
    )
    pos_loss, norm_fg_sum, neg_corr = pos_call(
        cls_rows, obj_row, predd_t, loc_t, stride_row, pergt)

    # ---- negative bag loss, background term (anchor-tiled accumulation) ---
    TA = _anchor_tile(A)
    neg_call = pl.pallas_call(
        _negative_bg_kernel,
        grid=(N, A // TA),
        in_specs=[
            pl.BlockSpec((1, K, TA), lambda i, a: (i, 0, a)),
            pl.BlockSpec((1, 1, TA), lambda i, a: (i, 0, a)),
        ],
        out_specs=pl.BlockSpec((1, 1, 1), lambda i, a: (i, 0, 0)),
        out_shape=jax.ShapeDtypeStruct((N, 1, 1), jnp.float32),
        compiler_params=pltpu.CompilerParams(
            dimension_semantics=("parallel", "arbitrary")),
    )
    neg_bg = neg_call(cls_ka, obj_row)                            # (N, 1, 1)

    # ---- final reductions (scalars) ----------------------------------------
    num_foreground = jnp.float32(N * G)
    num_background = jnp.sum(norm_fg_sum)
    positive_loss = jnp.sum(pos_loss) / jnp.maximum(1.0, num_foreground)
    negative_loss = (jnp.sum(neg_bg) + jnp.sum(neg_corr)) / jnp.maximum(1.0, num_background)
    gaussian_norm = G / jnp.maximum(norm_fg_sum[:, 0, 0], 1e-12)  # (N,)

    return {
        "loss_pos": positive_loss * FOCAL_ALPHA,
        "loss_neg": negative_loss * (1.0 - FOCAL_ALPHA),
        "loss_norm": jnp.mean(gaussian_norm) * (1.0 - FOCAL_ALPHA),
    }


if __name__ == "__main__":
    key = jax.random.PRNGKey(0)
    N, K, G = 2, 80, 8                     # images, classes, gt boxes / image
    fpn_strides = (8, 16)
    level_hw = ((8, 8), (4, 4))            # small synthetic FPN levels

    # shift generator (locations + per-anchor strides)
    locs, strs = [], []
    for (h, w), s in zip(level_hw, fpn_strides):
        ys = (jnp.arange(h, dtype=jnp.float32) + 0.5) * s
        xs = (jnp.arange(w, dtype=jnp.float32) + 0.5) * s
        yy, xx = jnp.meshgrid(ys, xs, indexing="ij")
        locs.append(jnp.stack([xx.ravel(), yy.ravel()], axis=-1))
        strs.append(jnp.full((h * w,), float(s), jnp.float32))
    locations = jnp.concatenate(locs, axis=0)     # (A, 2)
    strides = jnp.concatenate(strs, axis=0)       # (A,)
    A = locations.shape[0]

    # synthetic head outputs (backbone/head conv towers are external — see TODO)
    k1, k2, k3, k4, k5 = jax.random.split(key, 5)
    cls_logits = jax.random.normal(k1, (N, A, K), jnp.float32)
    delta_pred = jnp.abs(jax.random.normal(k2, (N, A, 4), jnp.float32)) * 12.0 + 2.0
    obj_logits = jax.random.normal(k3, (N, A, 1), jnp.float32)

    # synthetic ground-truth boxes (inside a 64x64 image) and labels
    xy0 = jax.random.uniform(k4, (N, G, 2), jnp.float32, 2.0, 40.0)
    wh = jax.random.uniform(k5, (N, G, 2), jnp.float32, 8.0, 24.0)
    gt_boxes = jnp.concatenate([xy0, xy0 + wh], axis=-1)
    gt_labels = jax.random.randint(jax.random.PRNGKey(1), (N, G), 0, K)

    # module parameters: self.mu = zeros(80, 2), self.sigma = ones(80, 2)
    mu = jnp.zeros((K, 2), jnp.float32)
    sigma = jnp.ones((K, 2), jnp.float32)

    losses = autoassign_losses(cls_logits, delta_pred, obj_logits, locations,
                               strides, gt_boxes, gt_labels, mu, sigma)
    losses = jax.tree_util.tree_map(jax.block_until_ready, losses)
    print("KERNEL_OK")
</pallas_src>

<mosaic_0001>
module attributes {stable_mosaic.version = 11 : i64} {
  func.func @_positive_kernel(%arg0: i32, %arg1: memref<1x8x80xf32, #tpu.memory_space<vmem>>, %arg2: memref<1x1x80xf32, #tpu.memory_space<vmem>>, %arg3: memref<1x4x80xf32, #tpu.memory_space<vmem>>, %arg4: memref<2x80xf32, #tpu.memory_space<vmem>>, %arg5: memref<1x80xf32, #tpu.memory_space<vmem>>, %arg6: memref<1x8x16xf32, #tpu.memory_space<vmem>>, %arg7: memref<1x8x1xf32, #tpu.memory_space<vmem>>, %arg8: memref<1x1x1xf32, #tpu.memory_space<vmem>>, %arg9: memref<1x1x1xf32, #tpu.memory_space<vmem>>) attributes {dimension_semantics = [#tpu.dimension_semantics<parallel>], iteration_bounds = array<i64: 2>, scalar_prefetch = 0 : i64, scratch_operands = 0 : i64, tpu.core_type = #tpu.core_type<tc>, window_params = [{transform_indices = @transform_0, window_bounds = array<i64: 1, 8, 80>}, {transform_indices = @transform_1, window_bounds = array<i64: 1, 1, 80>}, {transform_indices = @transform_2, window_bounds = array<i64: 1, 4, 80>}, {pipeline_mode = #tpu.pipeline_mode<synchronous>, transform_indices = @transform_3, window_bounds = array<i64: 2, 80>}, {pipeline_mode = #tpu.pipeline_mode<synchronous>, transform_indices = @transform_4, window_bounds = array<i64: 1, 80>}, {transform_indices = @transform_5, window_bounds = array<i64: 1, 8, 16>}, {transform_indices = @transform_6, window_bounds = array<i64: 1, 8, 1>}, {transform_indices = @transform_7, window_bounds = array<i64: 1, 1, 1>}, {transform_indices = @transform_8, window_bounds = array<i64: 1, 1, 1>}]} {
    %c0 = arith.constant 0 : index
    %c0_0 = arith.constant 0 : index
    %c0_1 = arith.constant 0 : index
    %0 = vector.load %arg1[%c0, %c0_0, %c0_1] : memref<1x8x80xf32, #tpu.memory_space<vmem>>, vector<1x8x80xf32>
    %1 = vector.shape_cast %0 : vector<1x8x80xf32> to vector<8x80xf32>
    %c0_2 = arith.constant 0 : index
    %c0_3 = arith.constant 0 : index
    %c0_4 = arith.constant 0 : index
    %2 = vector.load %arg2[%c0_2, %c0_3, %c0_4] : memref<1x1x80xf32, #tpu.memory_space<vmem>>, vector<1x1x80xf32>
    %3 = vector.shape_cast %2 : vector<1x1x80xf32> to vector<1x80xf32>
    %c0_5 = arith.constant 0 : index
    %c0_6 = arith.constant 0 : index
    %c0_7 = arith.constant 0 : index
    %4 = vector.load %arg3[%c0_5, %c0_6, %c0_7] : memref<1x4x80xf32, #tpu.memory_space<vmem>>, vector<1x4x80xf32>
    %5 = vector.shape_cast %4 : vector<1x4x80xf32> to vector<4x80xf32>
    %c0_8 = arith.constant 0 : index
    %c0_9 = arith.constant 0 : index
    %6 = vector.load %arg4[%c0_8, %c0_9] : memref<2x80xf32, #tpu.memory_space<vmem>>, vector<2x80xf32>
    %c0_10 = arith.constant 0 : index
    %c0_11 = arith.constant 0 : index
    %7 = vector.load %arg5[%c0_10, %c0_11] : memref<1x80xf32, #tpu.memory_space<vmem>>, vector<1x80xf32>
    %c0_12 = arith.constant 0 : index
    %c0_13 = arith.constant 0 : index
    %c0_14 = arith.constant 0 : index
    %8 = vector.load %arg6[%c0_12, %c0_13, %c0_14] : memref<1x8x16xf32, #tpu.memory_space<vmem>>, vector<1x8x16xf32>
    %9 = vector.shape_cast %8 : vector<1x8x16xf32> to vector<8x16xf32>
    %10 = arith.negf %3 : vector<1x80xf32>
    %11 = math.exp %10 : vector<1x80xf32>
    %cst = arith.constant 1.000000e+00 : f32
    %12 = vector.broadcast %cst : f32 to vector<1x80xf32>
    %13 = arith.addf %12, %11 : vector<1x80xf32>
    %14 = arith.divf %12, %13 : vector<1x80xf32>
    %15 = arith.negf %1 : vector<8x80xf32>
    %16 = math.exp %15 : vector<8x80xf32>
    %cst_15 = arith.constant 1.000000e+00 : f32
    %17 = vector.broadcast %cst_15 : f32 to vector<8x80xf32>
    %18 = arith.addf %17, %16 : vector<8x80xf32>
    %19 = arith.divf %17, %18 : vector<8x80xf32>
    %20 = vector.broadcast %14 : vector<1x80xf32> to vector<8x80xf32>
    %21 = arith.mulf %19, %20 : vector<8x80xf32>
    %22 = vector.extract_strided_slice %9 {offsets = [0, 0], sizes = [8, 1], strides = [1, 1]} : vector<8x16xf32> to vector<8x1xf32>
    %23 = vector.extract_strided_slice %9 {offsets = [0, 1], sizes = [8, 1], strides = [1, 1]} : vector<8x16xf32> to vector<8x1xf32>
    %24 = vector.extract_strided_slice %9 {offsets = [0, 2], sizes = [8, 1], strides = [1, 1]} : vector<8x16xf32> to vector<8x1xf32>
    %25 = vector.extract_strided_slice %9 {offsets = [0, 3], sizes = [8, 1], strides = [1, 1]} : vector<8x16xf32> to vector<8x1xf32>
    %26 = vector.extract_strided_slice %9 {offsets = [0, 4], sizes = [8, 1], strides = [1, 1]} : vector<8x16xf32> to vector<8x1xf32>
    %27 = vector.extract_strided_slice %9 {offsets = [0, 5], sizes = [8, 1], strides = [1, 1]} : vector<8x16xf32> to vector<8x1xf32>
    %28 = vector.extract_strided_slice %9 {offsets = [0, 6], sizes = [8, 1], strides = [1, 1]} : vector<8x16xf32> to vector<8x1xf32>
    %29 = vector.extract_strided_slice %9 {offsets = [0, 7], sizes = [8, 1], strides = [1, 1]} : vector<8x16xf32> to vector<8x1xf32>
    %30 = vector.extract_strided_slice %9 {offsets = [0, 8], sizes = [8, 8], strides = [1, 1]} : vector<8x16xf32> to vector<8x8xf32>
    %31 = vector.extract_strided_slice %6 {offsets = [0, 0], sizes = [1, 80], strides = [1, 1]} : vector<2x80xf32> to vector<1x80xf32>
    %32 = vector.extract_strided_slice %6 {offsets = [1, 0], sizes = [1, 80], strides = [1, 1]} : vector<2x80xf32> to vector<1x80xf32>
    %33 = vector.broadcast %31 : vector<1x80xf32> to vector<8x80xf32>
    %34 = vector.broadcast %22 : vector<8x1xf32> to vector<8x80xf32>
    %35 = arith.subf %33, %34 : vector<8x80xf32>
    %36 = vector.broadcast %32 : vector<1x80xf32> to vector<8x80xf32>
    %37 = vector.broadcast %23 : vector<8x1xf32> to vector<8x80xf32>
    %38 = arith.subf %36, %37 : vector<8x80xf32>
    %39 = vector.broadcast %24 : vector<8x1xf32> to vector<8x80xf32>
    %40 = vector.broadcast %31 : vector<1x80xf32> to vector<8x80xf32>
    %41 = arith.subf %39, %40 : vector<8x80xf32>
    %42 = vector.broadcast %25 : vector<8x1xf32> to vector<8x80xf32>
    %43 = vector.broadcast %32 : vector<1x80xf32> to vector<8x80xf32>
    %44 = arith.subf %42, %43 : vector<8x80xf32>
    %45 = arith.minimumf %35, %38 : vector<8x80xf32>
    %46 = arith.minimumf %41, %44 : vector<8x80xf32>
    %47 = arith.minimumf %45, %46 : vector<8x80xf32>
    %cst_16 = arith.constant 0.000000e+00 : f32
    %48 = vector.broadcast %cst_16 : f32 to vector<8x80xf32>
    %49 = arith.cmpf ogt, %47, %48 : vector<8x80xf32>
    %50 = arith.extui %49 : vector<8x80xi1> to vector<8x80xi32>
    %51 = arith.sitofp %50 : vector<8x80xi32> to vector<8x80xf32>
    %52 = vector.extract_strided_slice %5 {offsets = [0, 0], sizes = [1, 80], strides = [1, 1]} : vector<4x80xf32> to vector<1x80xf32>
    %53 = vector.extract_strided_slice %5 {offsets = [1, 0], sizes = [1, 80], strides = [1, 1]} : vector<4x80xf32> to vector<1x80xf32>
    %54 = vector.extract_strided_slice %5 {offsets = [2, 0], sizes = [1, 80], strides = [1, 1]} : vector<4x80xf32> to vector<1x80xf32>
    %55 = vector.extract_strided_slice %5 {offsets = [3, 0], sizes = [1, 80], strides = [1, 1]} : vector<4x80xf32> to vector<1x80xf32>
    %56 = arith.subf %31, %52 : vector<1x80xf32>
    %57 = arith.subf %32, %53 : vector<1x80xf32>
    %58 = arith.addf %31, %54 : vector<1x80xf32>
    %59 = arith.addf %32, %55 : vector<1x80xf32>
    %60 = arith.subf %24, %22 : vector<8x1xf32>
    %61 = arith.subf %25, %23 : vector<8x1xf32>
    %62 = arith.mulf %60, %61 : vector<8x1xf32>
    %63 = arith.subf %58, %56 : vector<1x80xf32>
    %64 = arith.subf %59, %57 : vector<1x80xf32>
    %65 = arith.mulf %63, %64 : vector<1x80xf32>
    %66 = vector.broadcast %24 : vector<8x1xf32> to vector<8x80xf32>
    %67 = vector.broadcast %58 : vector<1x80xf32> to vector<8x80xf32>
    %68 = arith.minimumf %66, %67 : vector<8x80xf32>
    %69 = vector.broadcast %22 : vector<8x1xf32> to vector<8x80xf32>
    %70 = vector.broadcast %56 : vector<1x80xf32> to vector<8x80xf32>
    %71 = arith.maximumf %69, %70 : vector<8x80xf32>
    %72 = arith.subf %68, %71 : vector<8x80xf32>
    %cst_17 = arith.constant 0.000000e+00 : f32
    %73 = vector.broadcast %cst_17 : f32 to vector<8x80xf32>
    %74 = arith.maximumf %72, %73 : vector<8x80xf32>
    %75 = vector.broadcast %25 : vector<8x1xf32> to vector<8x80xf32>
    %76 = vector.broadcast %59 : vector<1x80xf32> to vector<8x80xf32>
    %77 = arith.minimumf %75, %76 : vector<8x80xf32>
    %78 = vector.broadcast %23 : vector<8x1xf32> to vector<8x80xf32>
    %79 = vector.broadcast %57 : vector<1x80xf32> to vector<8x80xf32>
    %80 = arith.maximumf %78, %79 : vector<8x80xf32>
    %81 = arith.subf %77, %80 : vector<8x80xf32>
    %cst_18 = arith.constant 0.000000e+00 : f32
    %82 = vector.broadcast %cst_18 : f32 to vector<8x80xf32>
    %83 = arith.maximumf %81, %82 : vector<8x80xf32>
    %84 = arith.mulf %74, %83 : vector<8x80xf32>
    %cst_19 = arith.constant 0.000000e+00 : f32
    %85 = vector.broadcast %cst_19 : f32 to vector<8x80xf32>
    %86 = arith.cmpf ogt, %84, %85 : vector<8x80xf32>
    %87 = vector.broadcast %62 : vector<8x1xf32> to vector<8x80xf32>
    %88 = vector.broadcast %65 : vector<1x80xf32> to vector<8x80xf32>
    %89 = arith.addf %87, %88 : vector<8x80xf32>
    %90 = arith.subf %89, %84 : vector<8x80xf32>
    %91 = arith.divf %84, %90 : vector<8x80xf32>
    %cst_20 = arith.constant 0.000000e+00 : f32
    %92 = vector.broadcast %cst_20 : f32 to vector<8x80xf32>
    %93 = arith.select %86, %91, %92 : vector<8x80xi1>, vector<8x80xf32>
    %cst_21 = arith.constant dense<0xFF800000> : vector<80xf32>
    %94 = vector.multi_reduction <maximumf>, %93, %cst_21 [0] : vector<8x80xf32> to vector<80xf32>
    %95 = vector.shape_cast %94 : vector<80xf32> to vector<1x80xf32>
    %96 = arith.addf %22, %24 : vector<8x1xf32>
    %cst_22 = arith.constant 5.000000e-01 : f32
    %97 = vector.broadcast %cst_22 : f32 to vector<8x1xf32>
    %98 = arith.mulf %96, %97 : vector<8x1xf32>
    %99 = arith.addf %23, %25 : vector<8x1xf32>
    %cst_23 = arith.constant 5.000000e-01 : f32
    %100 = vector.broadcast %cst_23 : f32 to vector<8x1xf32>
    %101 = arith.mulf %99, %100 : vector<8x1xf32>
    %102 = vector.broadcast %31 : vector<1x80xf32> to vector<8x80xf32>
    %103 = vector.broadcast %98 : vector<8x1xf32> to vector<8x80xf32>
    %104 = arith.subf %102, %103 : vector<8x80xf32>
    %105 = vector.broadcast %7 : vector<1x80xf32> to vector<8x80xf32>
    %106 = arith.divf %104, %105 : vector<8x80xf32>
    %107 = vector.broadcast %32 : vector<1x80xf32> to vector<8x80xf32>
    %108 = vector.broadcast %101 : vector<8x1xf32> to vector<8x80xf32>
    %109 = arith.subf %107, %108 : vector<8x80xf32>
    %110 = vector.broadcast %7 : vector<1x80xf32> to vector<8x80xf32>
    %111 = arith.divf %109, %110 : vector<8x80xf32>
    %112 = vector.broadcast %26 : vector<8x1xf32> to vector<8x80xf32>
    %113 = arith.subf %106, %112 : vector<8x80xf32>
    %114 = arith.mulf %113, %113 : vector<8x80xf32>
    %cst_24 = arith.constant 0.000000e+00 : f32
    %115 = vector.broadcast %cst_24 : f32 to vector<8x80xf32>
    %116 = arith.subf %115, %114 : vector<8x80xf32>
    %cst_25 = arith.constant 2.000000e+00 : f32
    %117 = vector.broadcast %cst_25 : f32 to vector<8x1xf32>
    %118 = arith.mulf %117, %28 : vector<8x1xf32>
    %119 = arith.mulf %118, %28 : vector<8x1xf32>
    %120 = vector.broadcast %119 : vector<8x1xf32> to vector<8x80xf32>
    %121 = arith.divf %116, %120 : vector<8x80xf32>
    %122 = vector.broadcast %27 : vector<8x1xf32> to vector<8x80xf32>
    %123 = arith.subf %111, %122 : vector<8x80xf32>
    %124 = arith.mulf %123, %123 : vector<8x80xf32>
    %cst_26 = arith.constant 2.000000e+00 : f32
    %125 = vector.broadcast %cst_26 : f32 to vector<8x1xf32>
    %126 = arith.mulf %125, %29 : vector<8x1xf32>
    %127 = arith.mulf %126, %29 : vector<8x1xf32>
    %128 = vector.broadcast %127 : vector<8x1xf32> to vector<8x80xf32>
    %129 = arith.divf %124, %128 : vector<8x80xf32>
    %130 = arith.subf %121, %129 : vector<8x80xf32>
    %131 = math.exp %130 : vector<8x80xf32>
    %132 = arith.addf %54, %52 : vector<1x80xf32>
    %cst_27 = arith.constant 0.000000e+00 : f32
    %133 = vector.broadcast %cst_27 : f32 to vector<1x80xf32>
    %134 = arith.maximumf %132, %133 : vector<1x80xf32>
    %135 = arith.addf %55, %53 : vector<1x80xf32>
    %cst_28 = arith.constant 0.000000e+00 : f32
    %136 = vector.broadcast %cst_28 : f32 to vector<1x80xf32>
    %137 = arith.maximumf %135, %136 : vector<1x80xf32>
    %138 = arith.mulf %134, %137 : vector<1x80xf32>
    %139 = arith.addf %41, %35 : vector<8x80xf32>
    %cst_29 = arith.constant 0.000000e+00 : f32
    %140 = vector.broadcast %cst_29 : f32 to vector<8x80xf32>
    %141 = arith.maximumf %139, %140 : vector<8x80xf32>
    %142 = arith.addf %44, %38 : vector<8x80xf32>
    %cst_30 = arith.constant 0.000000e+00 : f32
    %143 = vector.broadcast %cst_30 : f32 to vector<8x80xf32>
    %144 = arith.maximumf %142, %143 : vector<8x80xf32>
    %145 = arith.mulf %141, %144 : vector<8x80xf32>
    %146 = vector.broadcast %54 : vector<1x80xf32> to vector<8x80xf32>
    %147 = arith.minimumf %146, %41 : vector<8x80xf32>
    %148 = vector.broadcast %52 : vector<1x80xf32> to vector<8x80xf32>
    %149 = arith.minimumf %148, %35 : vector<8x80xf32>
    %150 = arith.addf %147, %149 : vector<8x80xf32>
    %cst_31 = arith.constant 0.000000e+00 : f32
    %151 = vector.broadcast %cst_31 : f32 to vector<8x80xf32>
    %152 = arith.maximumf %150, %151 : vector<8x80xf32>
    %153 = vector.broadcast %55 : vector<1x80xf32> to vector<8x80xf32>
    %154 = arith.minimumf %153, %44 : vector<8x80xf32>
    %155 = vector.broadcast %53 : vector<1x80xf32> to vector<8x80xf32>
    %156 = arith.minimumf %155, %38 : vector<8x80xf32>
    %157 = arith.addf %154, %156 : vector<8x80xf32>
    %cst_32 = arith.constant 0.000000e+00 : f32
    %158 = vector.broadcast %cst_32 : f32 to vector<8x80xf32>
    %159 = arith.maximumf %157, %158 : vector<8x80xf32>
    %160 = arith.mulf %152, %159 : vector<8x80xf32>
    %161 = vector.broadcast %138 : vector<1x80xf32> to vector<8x80xf32>
    %162 = arith.addf %145, %161 : vector<8x80xf32>
    %163 = arith.subf %162, %160 : vector<8x80xf32>
    %cst_33 = arith.constant 1.1920929E-7 : f32
    %164 = vector.broadcast %cst_33 : f32 to vector<8x80xf32>
    %165 = arith.maximumf %163, %164 : vector<8x80xf32>
    %166 = tpu.reciprocal %165 {approx = true} : vector<8x80xf32> -> vector<8x80xf32>
    %167 = arith.mulf %160, %166 : vector<8x80xf32>
    %168 = vector.broadcast %54 : vector<1x80xf32> to vector<8x80xf32>
    %169 = arith.maximumf %168, %41 : vector<8x80xf32>
    %170 = vector.broadcast %52 : vector<1x80xf32> to vector<8x80xf32>
    %171 = arith.maximumf %170, %35 : vector<8x80xf32>
    %172 = arith.addf %169, %171 : vector<8x80xf32>
    %173 = vector.broadcast %55 : vector<1x80xf32> to vector<8x80xf32>
    %174 = arith.maximumf %173, %44 : vector<8x80xf32>
    %175 = vector.broadcast %53 : vector<1x80xf32> to vector<8x80xf32>
    %176 = arith.maximumf %175, %38 : vector<8x80xf32>
    %177 = arith.addf %174, %176 : vector<8x80xf32>
    %178 = arith.mulf %172, %177 : vector<8x80xf32>
    %179 = arith.subf %178, %163 : vector<8x80xf32>
    %cst_34 = arith.constant 1.1920929E-7 : f32
    %180 = vector.broadcast %cst_34 : f32 to vector<8x80xf32>
    %181 = arith.maximumf %178, %180 : vector<8x80xf32>
    %182 = tpu.reciprocal %181 {approx = true} : vector<8x80xf32> -> vector<8x80xf32>
    %183 = arith.mulf %179, %182 : vector<8x80xf32>
    %184 = arith.subf %167, %183 : vector<8x80xf32>
    %cst_35 = arith.constant 1.000000e+00 : f32
    %185 = vector.broadcast %cst_35 : f32 to vector<8x80xf32>
    %186 = arith.subf %185, %184 : vector<8x80xf32>
    %cst_36 = arith.constant 5.000000e+00 : f32
    %187 = vector.broadcast %cst_36 : f32 to vector<8x80xf32>
    %188 = arith.mulf %186, %187 : vector<8x80xf32>
    %cst_37 = arith.constant 0.000000e+00 : f32
    %189 = vector.broadcast %cst_37 : f32 to vector<8x80xf32>
    %190 = arith.subf %189, %188 : vector<8x80xf32>
    %191 = math.exp %190 : vector<8x80xf32>
    %192 = arith.mulf %21, %191 : vector<8x80xf32>
    %cst_38 = arith.constant 3.000000e+00 : f32
    %193 = vector.broadcast %cst_38 : f32 to vector<8x80xf32>
    %194 = arith.mulf %193, %192 : vector<8x80xf32>
    %195 = math.exp %194 : vector<8x80xf32>
    %196 = arith.mulf %195, %131 : vector<8x80xf32>
    %197 = arith.mulf %196, %51 : vector<8x80xf32>
    %cst_39 = arith.constant dense<0.000000e+00> : vector<8xf32>
    %198 = vector.multi_reduction <add>, %197, %cst_39 [1] : vector<8x80xf32> to vector<8xf32>
    %199 = vector.shape_cast %198 : vector<8xf32> to vector<8x1xf32>
    %cst_40 = arith.constant 9.99999996E-13 : f32
    %200 = vector.broadcast %cst_40 : f32 to vector<8x1xf32>
    %201 = arith.maximumf %199, %200 : vector<8x1xf32>
    %202 = tpu.reciprocal %201 {approx = true} : vector<8x1xf32> -> vector<8x1xf32>
    %203 = vector.broadcast %202 : vector<8x1xf32> to vector<8x80xf32>
    %204 = arith.mulf %197, %203 : vector<8x80xf32>
    %205 = arith.mulf %204, %192 : vector<8x80xf32>
    %cst_41 = arith.constant dense<0.000000e+00> : vector<8xf32>
    %206 = vector.multi_reduction <add>, %205, %cst_41 [1] : vector<8x80xf32> to vector<8xf32>
    %207 = vector.shape_cast %206 : vector<8xf32> to vector<8x1xf32>
    %208 = math.log %207 : vector<8x1xf32>
    %cst_42 = arith.constant -1.000000e+02 : f32
    %209 = vector.broadcast %cst_42 : f32 to vector<8x1xf32>
    %210 = arith.maximumf %208, %209 : vector<8x1xf32>
    %cst_43 = arith.constant 0.000000e+00 : f32
    %211 = vector.broadcast %cst_43 : f32 to vector<8x1xf32>
    %212 = arith.subf %211, %210 : vector<8x1xf32>
    %213 = vector.shape_cast %212 : vector<8x1xf32> to vector<1x8x1xf32>
    %c0_44 = arith.constant 0 : index
    %c0_45 = arith.constant 0 : index
    %c0_46 = arith.constant 0 : index
    %214 = vector.load %arg7[%c0_44, %c0_45, %c0_46] : memref<1x8x1xf32, #tpu.memory_space<vmem>>, vector<1x8x1xf32>
    tpu.vector_store %arg7[%c0_44, %c0_45, %c0_46], %213 {strides = array<i32>} : memref<1x8x1xf32, #tpu.memory_space<vmem>>, vector<1x8x1xf32>,
    %215 = arith.mulf %131, %51 : vector<8x80xf32>
    %216 = vector.shape_cast %215 : vector<8x80xf32> to vector<1x8x80xf32>
    %cst_47 = arith.constant dense<0.000000e+00> : vector<1xf32>
    %217 = vector.multi_reduction <add>, %216, %cst_47 [1, 2] : vector<1x8x80xf32> to vector<1xf32>
    %218 = vector.shape_cast %217 : vector<1xf32> to vector<1x1x1xf32>
    %219 = vector.extract %218[0, 0, 0] : f32 from vector<1x1x1xf32>
    %220 = vector.broadcast %219 : f32 to vector<1x1xf32>
    %221 = vector.shape_cast %220 : vector<1x1xf32> to vector<1x1x1xf32>
    %c0_48 = arith.constant 0 : index
    %c0_49 = arith.constant 0 : index
    %c0_50 = arith.constant 0 : index
    %222 = vector.load %arg8[%c0_48, %c0_49, %c0_50] : memref<1x1x1xf32, #tpu.memory_space<vmem>>, vector<1x1x1xf32>
    tpu.vector_store %arg8[%c0_48, %c0_49, %c0_50], %221 {strides = array<i32>} : memref<1x1x1xf32, #tpu.memory_space<vmem>>, vector<1x1x1xf32>,
    %cst_51 = arith.constant 1.000000e+00 : f32
    %223 = vector.broadcast %cst_51 : f32 to vector<1x80xf32>
    %224 = arith.subf %223, %95 : vector<1x80xf32>
    %cst_52 = arith.constant 9.99999996E-13 : f32
    %225 = vector.broadcast %cst_52 : f32 to vector<1x80xf32>
    %226 = arith.maximumf %224, %225 : vector<1x80xf32>
    %227 = tpu.reciprocal %226 {approx = true} : vector<1x80xf32> -> vector<1x80xf32>
    %cst_53 = arith.constant 0.000000e+00 : f32
    %228 = vector.broadcast %cst_53 : f32 to vector<8x80xf32>
    %229 = arith.cmpf ogt, %51, %228 : vector<8x80xf32>
    %cst_54 = arith.constant 1.000000e+30 : f32
    %230 = vector.shape_cast %227 : vector<1x80xf32> to vector<1x80xf32>
    %231 = vector.broadcast %230 : vector<1x80xf32> to vector<8x80xf32>
    %232 = vector.broadcast %cst_54 : f32 to vector<8x80xf32>
    %233 = arith.select %229, %231, %232 : vector<8x80xi1>, vector<8x80xf32>
    %cst_55 = arith.constant dense<0x7F800000> : vector<8xf32>
    %234 = vector.multi_reduction <minimumf>, %233, %cst_55 [1] : vector<8x80xf32> to vector<8xf32>
    %235 = vector.shape_cast %234 : vector<8xf32> to vector<8x1xf32>
    %cst_56 = arith.constant 0.000000e+00 : f32
    %236 = vector.broadcast %cst_56 : f32 to vector<8x80xf32>
    %237 = arith.cmpf ogt, %51, %236 : vector<8x80xf32>
    %cst_57 = arith.constant -1.000000e+30 : f32
    %238 = vector.shape_cast %227 : vector<1x80xf32> to vector<1x80xf32>
    %239 = vector.broadcast %238 : vector<1x80xf32> to vector<8x80xf32>
    %240 = vector.broadcast %cst_57 : f32 to vector<8x80xf32>
    %241 = arith.select %237, %239, %240 : vector<8x80xi1>, vector<8x80xf32>
    %cst_58 = arith.constant dense<0xFF800000> : vector<8xf32>
    %242 = vector.multi_reduction <maximumf>, %241, %cst_58 [1] : vector<8x80xf32> to vector<8xf32>
    %243 = vector.shape_cast %242 : vector<8xf32> to vector<8x1xf32>
    %244 = vector.broadcast %227 : vector<1x80xf32> to vector<8x80xf32>
    %245 = vector.broadcast %235 : vector<8x1xf32> to vector<8x80xf32>
    %246 = arith.subf %244, %245 : vector<8x80xf32>
    %cst_59 = arith.constant 9.99999996E-13 : f32
    %247 = vector.broadcast %cst_59 : f32 to vector<8x80xf32>
    %248 = arith.addf %246, %247 : vector<8x80xf32>
    %249 = arith.subf %243, %235 : vector<8x1xf32>
    %cst_60 = arith.constant 9.99999996E-13 : f32
    %250 = vector.broadcast %cst_60 : f32 to vector<8x1xf32>
    %251 = arith.addf %249, %250 : vector<8x1xf32>
    %252 = vector.broadcast %251 : vector<8x1xf32> to vector<8x80xf32>
    %253 = arith.divf %248, %252 : vector<8x80xf32>
    %cst_61 = arith.constant 0.000000e+00 : f32
    %254 = vector.broadcast %cst_61 : f32 to vector<8x80xf32>
    %255 = arith.cmpf ogt, %51, %254 : vector<8x80xf32>
    %cst_62 = arith.constant 0.000000e+00 : f32
    %256 = vector.broadcast %cst_62 : f32 to vector<8x80xf32>
    %257 = arith.select %255, %253, %256 : vector<8x80xi1>, vector<8x80xf32>
    %cst_63 = arith.constant dense<0.000000e+00> : vector<8x80xf32>
    %258 = tpu.matmul %30, %51, %cst_63 {dimension_numbers = #tpu.dot_dimension_numbers<[1], [0], [0], [1], [0, 0, 1, 1], [], []>} : vector<8x8xf32>, vector<8x80xf32>, vector<8x80xf32> -> vector<8x80xf32>
    %cst_64 = arith.constant 0.000000e+00 : f32
    %259 = vector.broadcast %cst_64 : f32 to vector<8x80xf32>
    %260 = arith.cmpf ole, %258, %259 : vector<8x80xf32>
    %261 = arith.extui %260 : vector<8x80xi1> to vector<8x80xi32>
    %262 = arith.sitofp %261 : vector<8x80xi32> to vector<8x80xf32>
    %263 = arith.mulf %51, %262 : vector<8x80xf32>
    %cst_65 = arith.constant 1.000000e+00 : f32
    %264 = vector.broadcast %cst_65 : f32 to vector<8x80xf32>
    %265 = arith.subf %264, %257 : vector<8x80xf32>
    %266 = arith.mulf %21, %265 : vector<8x80xf32>
    %267 = arith.mulf %266, %266 : vector<8x80xf32>
    %cst_66 = arith.constant 1.000000e+00 : f32
    %268 = vector.broadcast %cst_66 : f32 to vector<8x80xf32>
    %269 = arith.subf %268, %266 : vector<8x80xf32>
    %270 = math.log %269 : vector<8x80xf32>
    %cst_67 = arith.constant -1.000000e+02 : f32
    %271 = vector.broadcast %cst_67 : f32 to vector<8x80xf32>
    %272 = arith.maximumf %270, %271 : vector<8x80xf32>
    %cst_68 = arith.constant 0.000000e+00 : f32
    %273 = vector.broadcast %cst_68 : f32 to vector<8x80xf32>
    %274 = arith.subf %273, %272 : vector<8x80xf32>
    %275 = arith.mulf %267, %274 : vector<8x80xf32>
    %276 = arith.mulf %21, %21 : vector<8x80xf32>
    %cst_69 = arith.constant 1.000000e+00 : f32
    %277 = vector.broadcast %cst_69 : f32 to vector<8x80xf32>
    %278 = arith.subf %277, %21 : vector<8x80xf32>
    %279 = math.log %278 : vector<8x80xf32>
    %cst_70 = arith.constant -1.000000e+02 : f32
    %280 = vector.broadcast %cst_70 : f32 to vector<8x80xf32>
    %281 = arith.maximumf %279, %280 : vector<8x80xf32>
    %cst_71 = arith.constant 0.000000e+00 : f32
    %282 = vector.broadcast %cst_71 : f32 to vector<8x80xf32>
    %283 = arith.subf %282, %281 : vector<8x80xf32>
    %284 = arith.mulf %276, %283 : vector<8x80xf32>
    %285 = arith.subf %275, %284 : vector<8x80xf32>
    %286 = arith.mulf %285, %263 : vector<8x80xf32>
    %287 = vector.shape_cast %286 : vector<8x80xf32> to vector<1x8x80xf32>
    %cst_72 = arith.constant dense<0.000000e+00> : vector<1xf32>
    %288 = vector.multi_reduction <add>, %287, %cst_72 [1, 2] : vector<1x8x80xf32> to vector<1xf32>
    %289 = vector.shape_cast %288 : vector<1xf32> to vector<1x1x1xf32>
    %290 = vector.extract %289[0, 0, 0] : f32 from vector<1x1x1xf32>
    %291 = vector.broadcast %290 : f32 to vector<1x1xf32>
    %292 = vector.shape_cast %291 : vector<1x1xf32> to vector<1x1x1xf32>
    %c0_73 = arith.constant 0 : index
    %c0_74 = arith.constant 0 : index
    %c0_75 = arith.constant 0 : index
    %293 = vector.load %arg9[%c0_73, %c0_74, %c0_75] : memref<1x1x1xf32, #tpu.memory_space<vmem>>, vector<1x1x1xf32>
    tpu.vector_store %arg9[%c0_73, %c0_74, %c0_75], %292 {strides = array<i32>} : memref<1x1x1xf32, #tpu.memory_space<vmem>>, vector<1x1x1xf32>,
    return
  }
  func.func @transform_0(%arg0: i32) -> (i32, i32, i32) {
    %c0_i32 = arith.constant 0 : i32
    %c0_i32_0 = arith.constant 0 : i32
    %c0_i32_1 = arith.constant 0 : i32
    return %arg0, %c0_i32, %c0_i32_0 : i32, i32, i32
  }
  func.func @transform_1(%arg0: i32) -> (i32, i32, i32) {
    %c0_i32 = arith.constant 0 : i32
    %c0_i32_0 = arith.constant 0 : i32
    %c0_i32_1 = arith.constant 0 : i32
    return %arg0, %c0_i32, %c0_i32_0 : i32, i32, i32
  }
  func.func @transform_2(%arg0: i32) -> (i32, i32, i32) {
    %c0_i32 = arith.constant 0 : i32
    %c0_i32_0 = arith.constant 0 : i32
    %c0_i32_1 = arith.constant 0 : i32
    return %arg0, %c0_i32, %c0_i32_0 : i32, i32, i32
  }
  func.func @transform_3(%arg0: i32) -> (i32, i32) {
    %c0_i32 = arith.constant 0 : i32
    %c0_i32_0 = arith.constant 0 : i32
    %c0_i32_1 = arith.constant 0 : i32
    return %c0_i32, %c0_i32_0 : i32, i32
  }
  func.func @transform_4(%arg0: i32) -> (i32, i32) {
    %c0_i32 = arith.constant 0 : i32
    %c0_i32_0 = arith.constant 0 : i32
    %c0_i32_1 = arith.constant 0 : i32
    return %c0_i32, %c0_i32_0 : i32, i32
  }
  func.func @transform_5(%arg0: i32) -> (i32, i32, i32) {
    %c0_i32 = arith.constant 0 : i32
    %c0_i32_0 = arith.constant 0 : i32
    %c0_i32_1 = arith.constant 0 : i32
    return %arg0, %c0_i32, %c0_i32_0 : i32, i32, i32
  }
  func.func @transform_6(%arg0: i32) -> (i32, i32, i32) {
    %c0_i32 = arith.constant 0 : i32
    %c0_i32_0 = arith.constant 0 : i32
    %c0_i32_1 = arith.constant 0 : i32
    return %arg0, %c0_i32, %c0_i32_0 : i32, i32, i32
  }
  func.func @transform_7(%arg0: i32) -> (i32, i32, i32) {
    %c0_i32 = arith.constant 0 : i32
    %c0_i32_0 = arith.constant 0 : i32
    %c0_i32_1 = arith.constant 0 : i32
    return %arg0, %c0_i32, %c0_i32_0 : i32, i32, i32
  }
  func.func @transform_8(%arg0: i32) -> (i32, i32, i32) {
    %c0_i32 = arith.constant 0 : i32
    %c0_i32_0 = arith.constant 0 : i32
    %c0_i32_1 = arith.constant 0 : i32
    return %arg0, %c0_i32, %c0_i32_0 : i32, i32, i32
  }
}

</mosaic_0001>

<llo_original>
// kernel: tpu_custom_call.1
$region0: #{tpu_custom_call.1}
  #allocation0 [shape = 'u32[]', space=smem, size = 0x4, offset = 0x4, fixed_abs, tag = 'smem constant byte address 0x4 - core index']
  #allocation1 [shape = 'u32[72,128]{1,0:T(1,128)}', space=vmem, size = 0x9000, scoped, tag = 'internal scratch']
  %s0 = inlined_call_operand.hbm [shape: f32[2,8,80], index: 0, kind: input, shape index: {}]
  %s1 = inlined_call_operand.hbm [shape: f32[2,1,80], index: 1, kind: input, shape index: {}]
  %s2 = inlined_call_operand.hbm [shape: f32[2,4,80], index: 2, kind: input, shape index: {}]
  %s3 = inlined_call_operand.vmem [shape: f32[2,80], index: 3, kind: input, shape index: {}]
  %s4 = inlined_call_operand.vmem [shape: f32[1,80], index: 4, kind: input, shape index: {}]
  %s5 = inlined_call_operand.hbm [shape: f32[2,8,16], index: 5, kind: input, shape index: {}]
  %s6 = inlined_call_operand.vmem [shape: f32[2,8,1], index: 6, kind: output, shape index: {0}]
  %s7 = inlined_call_operand.vmem [shape: f32[2,1,1], index: 7, kind: output, shape index: {1}]
  %s8 = inlined_call_operand.vmem [shape: f32[2,1,1], index: 8, kind: output, shape index: {2}]
  %9 = xla_tuple %s6, %s7, %s8
  %s10 = sld [smem:[#allocation0]]
  $region89: #{tpu_custom_call.1} parent=0
    _
  %s12 = ssub.s32 1, %s10
  %s13 = scalar_select 0, %s12, %s10
  $region1: #{tpu_custom_call.1} parent=0
    #allocation2 [shape = 'u8[8192]{0}', space=vmem, size = 0x2000, scoped, tag = 'input window, operand 0']
    #allocation3 [shape = 's32[2]{0}', space=sflag, size = 0x8, scoped, tag = 'scoped memory for tpu_custom_call.1']
    #allocation4 [shape = 'u8[1024]{0}', space=vmem, size = 0x400, scoped, tag = 'input window, operand 1']
    #allocation5 [shape = 's32[2]{0}', space=sflag, size = 0x8, scoped, tag = 'scoped memory for tpu_custom_call.1']
    #allocation6 [shape = 'u8[4096]{0}', space=vmem, size = 0x1000, scoped, tag = 'input window, operand 2']
    #allocation7 [shape = 'u8[8192]{0}', space=vmem, size = 0x2000, scoped, tag = 'input window, operand 5']
    #allocation8 [shape = 's32[2]{0}', space=sflag, size = 0x8, scoped, tag = 'scoped memory for tpu_custom_call.1']
    %14 = vsyncpa [#allocation3], 0
    %s15 = scalar_lea.sflag [#allocation3], 1
    %16 = vsyncpa %s15, 0
    %17 = vsyncpa [#allocation5], 0
    %s18 = scalar_lea.sflag [#allocation5], 1
    %19 = vsyncpa %s18, 0
    %20 = vsyncpa [#allocation8], 0
    %s21 = scalar_lea.sflag [#allocation8], 1
    %22 = vsyncpa %s21, 0
    loop: start=0, step=1, limit=4
    $region2: #{tpu_custom_call.1} parent=1 // loop_pre_header
      _
    $region3: #{tpu_custom_call.1} parent=1 // loop_header
      %s24 = sphi 0, %s28
      %p25 = scmp.ge.s32.totalorder %s24, 4
      %s34 = sphi 0, %s36
      %s37 = sphi 0, %s34
      %s38 = sphi 0, %s37
      %s54 = sphi 0, %s38
      %s60 = sphi 0, %s62
      %s63 = sphi 0, %s60
      %s64 = sphi 0, %s63
      %s80 = sphi 0, %s64
      %s86 = sphi 0, %s88
      %s89 = sphi 0, %s86
      %s90 = sphi 0, %s89
      %s106 = sphi 0, %s90
      %s110 = sphi 0, %s110
      %s112 = sphi 0, %s110
      %s113 = sphi 0, %s112
      %s127 = sphi 0, %s113
      %s131 = sphi 0, %s131
      %s133 = sphi 0, %s131
      %s134 = sphi 0, %s133
      %s148 = sphi 0, %s134
      %s154 = sphi 0, %s156
      %s157 = sphi 0, %s154
      %s158 = sphi 0, %s157
      %s174 = sphi 0, %s158
      %s180 = sphi 0, %s182
      %s183 = sphi 0, %s180
      %s184 = sphi 0, %s183
      %s200 = sphi 0, %s184
      %s206 = sphi 0, %s208
      %s209 = sphi 0, %s206
      %s210 = sphi 0, %s209
      %s226 = sphi 0, %s210
      %s232 = sphi 0, %s234
      %s235 = sphi 0, %s232
      %s236 = sphi 0, %s235
      %s252 = sphi 0, %s236
    $region4: #{tpu_custom_call.1} parent=1 // loop_header_branch
      %27 = sbr.rel (%p25) target = $region8
    $region5: #{tpu_custom_call.1} parent=1 // loop_body
      %s29 = ssub.s32 %s24, 1
      %s30 = ssub.s32 %s24, 2
      %s31 = sadd.s32 %s24, 1
      %s32 = ssub.s32 %s24, %s31
      %p33 = scmp.eq.s32.totalorder %s32, 0
      %s35 = sadd.s32 %s34, 1
      %s36 = scalar_select %p33, %s34, %s35
      %p39 = pneg %p33
      %p40 = scmp.eq.s32.totalorder %s24, 1
      %p41 = por %p39, %p40
      %p42 = scmp.ne.s32.totalorder %s34, %s37
      %p43 = scmp.eq.s32.totalorder %s24, 0
      %p44 = por %p42, %p43
      %p45 = scmp.ne.s32.totalorder %s34, %s37
      %p46 = scmp.eq.s32.totalorder %s29, 1
      %p47 = por %p45, %p46
      %p48 = scmp.ne.s32.totalorder %s37, %s38
      %p49 = scmp.eq.s32.totalorder %s29, 0
      %p50 = por %p48, %p49
      %p51 = scmp.ne.s32.totalorder %s37, %s38
      %p52 = scmp.eq.s32.totalorder %s30, 1
      %p53 = por %p51, %p52
      %p55 = scmp.ne.s32.totalorder %s38, %s54
      %p56 = scmp.eq.s32.totalorder %s30, 0
      %p57 = por %p55, %p56
      %s58 = ssub.s32 %s24, %s31
      %p59 = scmp.eq.s32.totalorder %s58, 0
      %s61 = sadd.s32 %s60, 1
      %s62 = scalar_select %p59, %s60, %s61
      %p65 = pneg %p59
      %p66 = scmp.eq.s32.totalorder %s24, 1
      %p67 = por %p65, %p66
      %p68 = scmp.ne.s32.totalorder %s60, %s63
      %p69 = scmp.eq.s32.totalorder %s24, 0
      %p70 = por %p68, %p69
      %p71 = scmp.ne.s32.totalorder %s60, %s63
      %p72 = scmp.eq.s32.totalorder %s29, 1
      %p73 = por %p71, %p72
      %p74 = scmp.ne.s32.totalorder %s63, %s64
      %p75 = scmp.eq.s32.totalorder %s29, 0
      %p76 = por %p74, %p75
      %p77 = scmp.ne.s32.totalorder %s63, %s64
      %p78 = scmp.eq.s32.totalorder %s30, 1
      %p79 = por %p77, %p78
      %p81 = scmp.ne.s32.totalorder %s64, %s80
      %p82 = scmp.eq.s32.totalorder %s30, 0
      %p83 = por %p81, %p82
      %s84 = ssub.s32 %s24, %s31
      %p85 = scmp.eq.s32.totalorder %s84, 0
      %s87 = sadd.s32 %s86, 1
      %s88 = scalar_select %p85, %s86, %s87
      %p91 = pneg %p85
      %p92 = scmp.eq.s32.totalorder %s24, 1
      %p93 = por %p91, %p92
      %p94 = scmp.ne.s32.totalorder %s86, %s89
      %p95 = scmp.eq.s32.totalorder %s24, 0
      %p96 = por %p94, %p95
      %p97 = scmp.ne.s32.totalorder %s86, %s89
      %p98 = scmp.eq.s32.totalorder %s29, 1
      %p99 = por %p97, %p98
      %p100 = scmp.ne.s32.totalorder %s89, %s90
      %p101 = scmp.eq.s32.totalorder %s29, 0
      %p102 = por %p100, %p101
      %p103 = scmp.ne.s32.totalorder %s89, %s90
      %p104 = scmp.eq.s32.totalorder %s30, 1
      %p105 = por %p103, %p104
      %p107 = scmp.ne.s32.totalorder %s90, %s106
      %p108 = scmp.eq.s32.totalorder %s30, 0
      %p109 = por %p107, %p108
      %s111 = sadd.s32 %s110, 1
      %p114 = scmp.eq.s32.totalorder %s24, 1
      %p115 = scmp.ne.s32.totalorder %s110, %s112
      %p116 = scmp.eq.s32.totalorder %s24, 0
      %p117 = por %p115, %p116
      %p118 = scmp.ne.s32.totalorder %s110, %s112
      %p119 = scmp.eq.s32.totalorder %s29, 1
      %p120 = por %p118, %p119
      %p121 = scmp.ne.s32.totalorder %s112, %s113
      %p122 = scmp.eq.s32.totalorder %s29, 0
      %p123 = por %p121, %p122
      %p124 = scmp.ne.s32.totalorder %s112, %s113
      %p125 = scmp.eq.s32.totalorder %s30, 1
      %p126 = por %p124, %p125
      %p128 = scmp.ne.s32.totalorder %s113, %s127
      %p129 = scmp.eq.s32.totalorder %s30, 0
      %p130 = por %p128, %p129
      %s132 = sadd.s32 %s131, 1
      %p135 = scmp.eq.s32.totalorder %s24, 1
      %p136 = scmp.ne.s32.totalorder %s131, %s133
      %p137 = scmp.eq.s32.totalorder %s24, 0
      %p138 = por %p136, %p137
      %p139 = scmp.ne.s32.totalorder %s131, %s133
      %p140 = scmp.eq.s32.totalorder %s29, 1
      %p141 = por %p139, %p140
      %p142 = scmp.ne.s32.totalorder %s133, %s134
      %p143 = scmp.eq.s32.totalorder %s29, 0
      %p144 = por %p142, %p143
      %p145 = scmp.ne.s32.totalorder %s133, %s134
      %p146 = scmp.eq.s32.totalorder %s30, 1
      %p147 = por %p145, %p146
      %p149 = scmp.ne.s32.totalorder %s134, %s148
      %p150 = scmp.eq.s32.totalorder %s30, 0
      %p151 = por %p149, %p150
      %s152 = ssub.s32 %s24, %s31
      %p153 = scmp.eq.s32.totalorder %s152, 0
      %s155 = sadd.s32 %s154, 1
      %s156 = scalar_select %p153, %s154, %s155
      %p159 = pneg %p153
      %p160 = scmp.eq.s32.totalorder %s24, 1
      %p161 = por %p159, %p160
      %p162 = scmp.ne.s32.totalorder %s154, %s157
      %p163 = scmp.eq.s32.totalorder %s24, 0
      %p164 = por %p162, %p163
      %p165 = scmp.ne.s32.totalorder %s154, %s157
      %p166 = scmp.eq.s32.totalorder %s29, 1
      %p167 = por %p165, %p166
      %p168 = scmp.ne.s32.totalorder %s157, %s158
      %p169 = scmp.eq.s32.totalorder %s29, 0
      %p170 = por %p168, %p169
      %p171 = scmp.ne.s32.totalorder %s157, %s158
      %p172 = scmp.eq.s32.totalorder %s30, 1
      %p173 = por %p171, %p172
      %p175 = scmp.ne.s32.totalorder %s158, %s174
      %p176 = scmp.eq.s32.totalorder %s30, 0
      %p177 = por %p175, %p176
      %s178 = ssub.s32 %s24, %s31
      %p179 = scmp.eq.s32.totalorder %s178, 0
      %s181 = sadd.s32 %s180, 1
      %s182 = scalar_select %p179, %s180, %s181
      %p185 = pneg %p179
      %p186 = scmp.eq.s32.totalorder %s24, 1
      %p187 = por %p185, %p186
      %p188 = scmp.ne.s32.totalorder %s180, %s183
      %p189 = scmp.eq.s32.totalorder %s24, 0
      %p190 = por %p188, %p189
      %p191 = scmp.ne.s32.totalorder %s180, %s183
      %p192 = scmp.eq.s32.totalorder %s29, 1
      %p193 = por %p191, %p192
      %p194 = scmp.ne.s32.totalorder %s183, %s184
      %p195 = scmp.eq.s32.totalorder %s29, 0
      %p196 = por %p194, %p195
      %p197 = scmp.ne.s32.totalorder %s183, %s184
      %p198 = scmp.eq.s32.totalorder %s30, 1
      %p199 = por %p197, %p198
      %p201 = scmp.ne.s32.totalorder %s184, %s200
      %p202 = scmp.eq.s32.totalorder %s30, 0
      %p203 = por %p201, %p202
      %s204 = ssub.s32 %s24, %s31
      %p205 = scmp.eq.s32.totalorder %s204, 0
      %s207 = sadd.s32 %s206, 1
      %s208 = scalar_select %p205, %s206, %s207
      %p211 = pneg %p205
      %p212 = scmp.eq.s32.totalorder %s24, 1
      %p213 = por %p211, %p212
      %p214 = scmp.ne.s32.totalorder %s206, %s209
      %p215 = scmp.eq.s32.totalorder %s24, 0
      %p216 = por %p214, %p215
      %p217 = scmp.ne.s32.totalorder %s206, %s209
      %p218 = scmp.eq.s32.totalorder %s29, 1
      %p219 = por %p217, %p218
      %p220 = scmp.ne.s32.totalorder %s209, %s210
      %p221 = scmp.eq.s32.totalorder %s29, 0
      %p222 = por %p220, %p221
      %p223 = scmp.ne.s32.totalorder %s209, %s210
      %p224 = scmp.eq.s32.totalorder %s30, 1
      %p225 = por %p223, %p224
      %p227 = scmp.ne.s32.totalorder %s210, %s226
      %p228 = scmp.eq.s32.totalorder %s30, 0
      %p229 = por %p227, %p228
      %s230 = ssub.s32 %s24, %s31
      %p231 = scmp.eq.s32.totalorder %s230, 0
      %s233 = sadd.s32 %s232, 1
      %s234 = scalar_select %p231, %s232, %s233
      %p237 = pneg %p231
      %p238 = scmp.eq.s32.totalorder %s24, 1
      %p239 = por %p237, %p238
      %p240 = scmp.ne.s32.totalorder %s232, %s235
      %p241 = scmp.eq.s32.totalorder %s24, 0
      %p242 = por %p240, %p241
      %p243 = scmp.ne.s32.totalorder %s232, %s235
      %p244 = scmp.eq.s32.totalorder %s29, 1
      %p245 = por %p243, %p244
      %p246 = scmp.ne.s32.totalorder %s235, %s236
      %p247 = scmp.eq.s32.totalorder %s29, 0
      %p248 = por %p246, %p247
      %p249 = scmp.ne.s32.totalorder %s235, %s236
      %p250 = scmp.eq.s32.totalorder %s30, 1
      %p251 = por %p249, %p250
      %p253 = scmp.ne.s32.totalorder %s236, %s252
      %p254 = scmp.eq.s32.totalorder %s30, 0
      %p255 = por %p253, %p254
      %p256 = scmp.le.s32.totalorder 1, %s24
      %p257 = scmp.lt.s32.totalorder %s24, 3
      %p258 = pnand %p256, %p257
      %p259 = pneg %p258
      // Predicated region
      $region9: #{tpu_custom_call.1} parent=5 // pred_check
        _
      $region10: #{tpu_custom_call.1} parent=5 // pred_check_branch
        %261 = sbr.rel (%p258) target = $region12
      $region11: #{tpu_custom_call.1} parent=5 // pred_region
        %s262 = ssub.s32 %s24, 1
        // Predicated region
        $region13: #{tpu_custom_call.1} parent=11 // pred_check
          %p263 = pneg %p123
        $region14: #{tpu_custom_call.1} parent=11 // pred_check_branch
          %265 = sbr.rel (%p263) target = $region16
        $region15: #{tpu_custom_call.1} parent=11 // pred_region
          _
        $region16: #{tpu_custom_call.1} parent=11 // pred_fallthru
          _
        // Predicated region
        $region17: #{tpu_custom_call.1} parent=11 // pred_check
          %p266 = pneg %p144
        $region18: #{tpu_custom_call.1} parent=11 // pred_check_branch
          %268 = sbr.rel (%p266) target = $region20
        $region19: #{tpu_custom_call.1} parent=11 // pred_region
          _
        $region20: #{tpu_custom_call.1} parent=11 // pred_fallthru
          _
      $region12: #{tpu_custom_call.1} parent=5 // pred_fallthru
        _
      %p269 = scmp.lt.s32.totalorder %s24, 2
      // Predicated region
      $region21: #{tpu_custom_call.1} parent=5 // pred_check
        %p270 = pneg %p269
      $region22: #{tpu_custom_call.1} parent=5 // pred_check_branch
        %272 = sbr.rel (%p270) target = $region24
      $region23: #{tpu_custom_call.1} parent=5 // pred_region
        // Predicated region
        $region25: #{tpu_custom_call.1} parent=23 // pred_check
          %p273 = pneg %p44
        $region26: #{tpu_custom_call.1} parent=23 // pred_check_branch
          %275 = sbr.rel (%p273) target = $region28
        $region27: #{tpu_custom_call.1} parent=23 // pred_region
          %s276 = sand.u32 %s34, 1
          %s277 = scalar_lea.sflag [#allocation3], %s276
          %s278 = sand.u32 %s34, 1
          %s279 = smul.addr %s278, 8
          %s280 = scalar_lea.vmem [#allocation2], %s279
          %282 = vsyncadd %s277, 0
          %s283 = smul.addr %s24, 8
          %s284 = scalar_lea.hbm %s0, %s283
          %s286 = sshll.u32 %s284, 4
          %s287 = int_to_ptr.hbm [resolvable:$true] %s286
          %s288 = sshll.u32 %s280, 4
          %s289 = int_to_ptr.vmem [resolvable:$true] %s288
          %291 = dma.hbm_to_vmem [thread:$0]  %s287, 128, %s289, %s277
        $region28: #{tpu_custom_call.1} parent=23 // pred_fallthru
          _
        // Predicated region
        $region29: #{tpu_custom_call.1} parent=23 // pred_check
          %p292 = pneg %p70
        $region30: #{tpu_custom_call.1} parent=23 // pred_check_branch
          %294 = sbr.rel (%p292) target = $region32
        $region31: #{tpu_custom_call.1} parent=23 // pred_region
          %s295 = sand.u32 %s24, 1
          %s296 = scalar_lea.sflag [#allocation5], %s295
          %s297 = sand.u32 %s60, 1
          %s298 = scalar_lea.vmem [#allocation4], %s297
          %300 = vsyncadd %s296, 0
          %s301 = scalar_lea.hbm %s1, %s24
          %s303 = sshll.u32 %s301, 4
          %s304 = int_to_ptr.hbm [resolvable:$true] %s303
          %s305 = sshll.u32 %s298, 4
          %s306 = int_to_ptr.vmem [resolvable:$true] %s305
          %308 = dma.hbm_to_vmem [thread:$0]  %s304, 16, %s306, %s296
        $region32: #{tpu_custom_call.1} parent=23 // pred_fallthru
          _
        // Predicated region
        $region33: #{tpu_custom_call.1} parent=23 // pred_check
          %p309 = pneg %p96
        $region34: #{tpu_custom_call.1} parent=23 // pred_check_branch
          %311 = sbr.rel (%p309) target = $region36
        $region35: #{tpu_custom_call.1} parent=23 // pred_region
          %s312 = sand.u32 %s24, 1
          %s313 = scalar_lea.sflag [#allocation5], %s312
          %s314 = sand.u32 %s86, 1
          %s315 = smul.addr %s314, 4
          %s316 = scalar_lea.vmem [#allocation6], %s315
          %318 = vsyncadd %s313, 0
          %s319 = smul.addr %s24, 4
          %s320 = scalar_lea.hbm %s2, %s319
          %s322 = sshll.u32 %s320, 4
          %s323 = int_to_ptr.hbm [resolvable:$true] %s322
          %s324 = sshll.u32 %s316, 4
          %s325 = int_to_ptr.vmem [resolvable:$true] %s324
          %327 = dma.hbm_to_vmem [thread:$0]  %s323, 64, %s325, %s313
        $region36: #{tpu_custom_call.1} parent=23 // pred_fallthru
          _
        // Predicated region
        $region37: #{tpu_custom_call.1} parent=23 // pred_check
          %p328 = pneg %p164
        $region38: #{tpu_custom_call.1} parent=23 // pred_check_branch
          %330 = sbr.rel (%p328) target = $region40
        $region39: #{tpu_custom_call.1} parent=23 // pred_region
          %s331 = sand.u32 %s154, 1
          %s332 = scalar_lea.sflag [#allocation8], %s331
          %s333 = sand.u32 %s154, 1
          %s334 = smul.addr %s333, 8
          %s335 = scalar_lea.vmem [#allocation7], %s334
          %337 = vsyncadd %s332, 0
          %s338 = smul.addr %s24, 8
          %s339 = scalar_lea.hbm %s5, %s338
          %s341 = sshll.u32 %s339, 4
          %s342 = int_to_ptr.hbm [resolvable:$true] %s341
          %s343 = sshll.u32 %s335, 4
          %s344 = int_to_ptr.vmem [resolvable:$true] %s343
          %346 = dma.hbm_to_vmem [thread:$0]  %s342, 128, %s344, %s332
        $region40: #{tpu_custom_call.1} parent=23 // pred_fallthru
          _
      $region24: #{tpu_custom_call.1} parent=5 // pred_fallthru
        _
      %p347 = scmp.le.s32.totalorder 1, %s24
      %p348 = scmp.lt.s32.totalorder %s24, 3
      %p349 = pnand %p347, %p348
      %p350 = pneg %p349
      // Predicated region
      $region41: #{tpu_custom_call.1} parent=5 // pred_check
        _
      $region42: #{tpu_custom_call.1} parent=5 // pred_check_branch
        %352 = sbr.rel (%p349) target = $region44
      $region43: #{tpu_custom_call.1} parent=5 // pred_region
        %s353 = ssub.s32 %s24, 1
        %s354 = sand.u32 %s37, 1
        %s355 = scalar_lea.sflag [#allocation3], %s354
        %s356 = sand.u32 %s37, 1
        %s357 = smul.addr %s356, 8
        %s358 = scalar_lea.vmem [#allocation2], %s357
        // Predicated region
        $region45: #{tpu_custom_call.1} parent=43 // pred_check
          %p359 = pneg %p50
        $region46: #{tpu_custom_call.1} parent=43 // pred_check_branch
          %361 = sbr.rel (%p359) target = $region48
        $region47: #{tpu_custom_call.1} parent=43 // pred_region
          %363 = dma.done %s355, 128
        $region48: #{tpu_custom_call.1} parent=43 // pred_fallthru
          _
        %s364 = sand.u32 %s29, 1
        %s365 = scalar_lea.sflag [#allocation5], %s364
        %s366 = sand.u32 %s63, 1
        %s367 = scalar_lea.vmem [#allocation4], %s366
        // Predicated region
        $region49: #{tpu_custom_call.1} parent=43 // pred_check
          %p368 = pneg %p76
        $region50: #{tpu_custom_call.1} parent=43 // pred_check_branch
          %370 = sbr.rel (%p368) target = $region52
        $region51: #{tpu_custom_call.1} parent=43 // pred_region
          %372 = dma.done %s365, 16
        $region52: #{tpu_custom_call.1} parent=43 // pred_fallthru
          _
        %s373 = sand.u32 %s29, 1
        %s374 = scalar_lea.sflag [#allocation5], %s373
        %s375 = sand.u32 %s89, 1
        %s376 = smul.addr %s375, 4
        %s377 = scalar_lea.vmem [#allocation6], %s376
        // Predicated region
        $region53: #{tpu_custom_call.1} parent=43 // pred_check
          %p378 = pneg %p102
        $region54: #{tpu_custom_call.1} parent=43 // pred_check_branch
          %380 = sbr.rel (%p378) target = $region56
        $region55: #{tpu_custom_call.1} parent=43 // pred_region
          %382 = dma.done %s374, 64
        $region56: #{tpu_custom_call.1} parent=43 // pred_fallthru
          _
        %s383 = sand.u32 %s157, 1
        %s384 = scalar_lea.sflag [#allocation8], %s383
        %s385 = sand.u32 %s157, 1
        %s386 = smul.addr %s385, 8
        %s387 = scalar_lea.vmem [#allocation7], %s386
        // Predicated region
        $region57: #{tpu_custom_call.1} parent=43 // pred_check
          %p388 = pneg %p170
        $region58: #{tpu_custom_call.1} parent=43 // pred_check_branch
          %390 = sbr.rel (%p388) target = $region60
        $region59: #{tpu_custom_call.1} parent=43 // pred_region
          %392 = dma.done %s384, 128
        $region60: #{tpu_custom_call.1} parent=43 // pred_fallthru
          _
        %s393 = sand.u32 %s37, 1
        %s394 = scalar_lea.sflag [#allocation3], %s393
        %s395 = sand.u32 %s37, 1
        %s396 = smul.addr %s395, 8
        %s397 = scalar_lea.vmem [#allocation2], %s396
        %p398 = pneg %p50
        %p399 = pneg %p47
        %s400 = sand.u32 %s29, 1
        %s401 = scalar_lea.sflag [#allocation5], %s400
        %s402 = sand.u32 %s63, 1
        %s403 = scalar_lea.vmem [#allocation4], %s402
        %p404 = pneg %p76
        %p405 = pneg %p73
        %s406 = sand.u32 %s29, 1
        %s407 = scalar_lea.sflag [#allocation5], %s406
        %s408 = sand.u32 %s89, 1
        %s409 = smul.addr %s408, 4
        %s410 = scalar_lea.vmem [#allocation6], %s409
        %p411 = pneg %p102
        %p412 = pneg %p99
        %p413 = pneg %p123
        %p414 = pneg %p120
        %p415 = pneg %p144
        %p416 = pneg %p141
        %s417 = sand.u32 %s157, 1
        %s418 = scalar_lea.sflag [#allocation8], %s417
        %s419 = sand.u32 %s157, 1
        %s420 = smul.addr %s419, 8
        %s421 = scalar_lea.vmem [#allocation7], %s420
        %p422 = pneg %p170
        %p423 = pneg %p167
        %p424 = pneg %p196
        %p425 = pneg %p193
        %p426 = scmp.lt.s32.totalorder %s29, 1
        %s427 = scalar_select %p426, %s29, 1
        %s428 = smul.addr %s427, 8
        %s429 = scalar_lea.vmem %s6, %s428
        %p430 = pneg %p222
        %p431 = pneg %p219
        %p432 = scmp.lt.s32.totalorder %s29, 1
        %s433 = scalar_select %p432, %s29, 1
        %s434 = scalar_lea.vmem %s7, %s433
        %p435 = pneg %p248
        %p436 = pneg %p245
        %p437 = scmp.lt.s32.totalorder %s29, 1
        %s438 = scalar_select %p437, %s29, 1
        %s439 = scalar_lea.vmem %s8, %s438
        %p440 = scmp.lt.s32.totalorder %s29, 1
        %s441 = scalar_select %p440, %s29, 1
        %s442 = smul.addr %s441, 8
        %s443 = scalar_lea.vmem %s6, %s442
        %p444 = scmp.lt.s32.totalorder %s29, 1
        %s445 = scalar_select %p444, %s29, 1
        %s446 = scalar_lea.vmem %s7, %s445
        %p447 = scmp.lt.s32.totalorder %s29, 1
        %s448 = scalar_select %p447, %s29, 1
        %s449 = scalar_lea.vmem %s8, %s448
        %v450 = vld [vmem:[%s358] sm:$0xff]
        %v451 = vld [vmem:[%s367] sm:$0x1]
        %v452 = vld [vmem:[%s377] sm:$0xf]
        %v453 = vld [vmem:[%s3] sm:$0x3]
        %v454 = vld [vmem:[%s4] sm:$0x1]
        %v455 = vld [vmem:[%s387] sm:$0xff]
        %v456 = vxor.u32 %v451, 2147483648
        %v457 = vmul.f32 %v456, 1.442695
        %v458 = vpow.pop %v457
        %v459 = vadd.f32 %v458, 1.0
        %v460 = vrcp.pop %v459
        %v461 = vmul.f32 %v459, %v460
        %v462 = vsub.f32 1.0, %v461
        %v463 = vmul.f32 %v460, %v462
        %v464 = vadd.f32 %v460, %v463
        %vm465 = vweird.f32 %v459
        %vm466 = vweird.f32 %v460
        %vm467 = vmor %vm465, %vm466
        %v468 = vsel %vm467, %v460, %v464
        %v469 = vand.u32 2147483647, %v459
        %vm470 = vcmp.eq.f32.partialorder %v469, 8.507059e+37
        %v471 = vand.u32 %v459, 2147483648
        %v472 = vor.u32 1.1754944e-38, %v471
        %v473 = vsel %vm470, %v472, %v468
        %v474 = vmul.f32 1.0, %v473
        %v475 = vxor.u32 %v450, 2147483648
        %v476 = vmul.f32 %v475, 1.442695
        %v477 = vpow.pop %v476
        %v478 = vadd.f32 %v477, 1.0
        %v479 = vrcp.pop %v478
        %v480 = vmul.f32 %v478, %v479
        %v481 = vsub.f32 1.0, %v480
        %v482 = vmul.f32 %v479, %v481
        %v483 = vadd.f32 %v479, %v482
        %vm484 = vweird.f32 %v478
        %vm485 = vweird.f32 %v479
        %vm486 = vmor %vm484, %vm485
        %v487 = vsel %vm486, %v479, %v483
        %v488 = vand.u32 2147483647, %v478
        %vm489 = vcmp.eq.f32.partialorder %v488, 8.507059e+37
        %v490 = vand.u32 %v478, 2147483648
        %v491 = vor.u32 1.1754944e-38, %v490
        %v492 = vsel %vm489, %v491, %v487
        %v493 = vmul.f32 1.0, %v492
        %v495 = vperm.slane %v474, 0
        %v497 = vmul.f32 %v493, %v495
        %v498 = vperm.slane %v453, 0
        %500 = vset.pattern.permute.xlu0 0
        %501 = vperm.xlu0 %500, %v455
        %v502 = vpop.permute.xlu0 %501
        %v504 = vsub.f32 %v498, %v502
        %v505 = vperm.slane %v453, 1
        %506 = vset.pattern.permute.xlu0 1
        %507 = vperm.xlu0 %506, %v455
        %v508 = vpop.permute.xlu0 %507
        %v510 = vsub.f32 %v505, %v508
        %511 = vset.pattern.permute.xlu0 2
        %512 = vperm.xlu0 %511, %v455
        %v513 = vpop.permute.xlu0 %512
        %v515 = vsub.f32 %v513, %v498
        %516 = vset.pattern.permute.xlu0 3
        %517 = vperm.xlu0 %516, %v455
        %v518 = vpop.permute.xlu0 %517
        %v520 = vsub.f32 %v518, %v505
        %v521 = vmin.f32 %v504, %v510
        %v522 = vmin.f32 %v515, %v520
        %v523 = vmin.f32 %v521, %v522
        %vm524 = vcmp.gt.f32.partialorder %v523, 0.0
        %v525 = vsel %vm524, 1, 0
        %v526 = vcvt.s32.f32 %v525
        %v527 = vsub.f32 %v453, %v452
        %v529 = vrot.slane %v452, 2
        %v531 = vadd.f32 %v453, %v529
        %532 = vrot.lane.b32.xlu0 %v455, 2
        %v533 = vpop.permute.xlu0 %532
        %v535 = vsub.f32 %v455, %v533
        %537 = vrot.lane.b32.xlu0 %v535, 127
        %v538 = vpop.permute.xlu0 %537
        %v540 = vmul.f32 %v535, %v538
        %v541 = vsub.f32 %v531, %v527
        %v543 = vrot.slane %v541, 1
        %v545 = vmul.f32 %v541, %v543
        %v546 = vperm.slane %v531, 0
        %v547 = vmin.f32 %v513, %v546
        %v548 = vperm.slane %v527, 0
        %v549 = vmax.f32 %v502, %v548
        %v550 = vsub.f32 %v547, %v549
        %v551 = vmax.f32 %v550, 0.0
        %v552 = vperm.slane %v531, 1
        %v553 = vmin.f32 %v518, %v552
        %v554 = vperm.slane %v527, 1
        %v555 = vmax.f32 %v508, %v554
        %v556 = vsub.f32 %v553, %v555
        %v557 = vmax.f32 %v556, 0.0
        %v558 = vmul.f32 %v551, %v557
        %vm559 = vcmp.gt.f32.partialorder %v558, 0.0
        %561 = vset.pattern.permute.xlu0 2
        %562 = vperm.xlu0 %561, %v540
        %v563 = vpop.permute.xlu0 %562
        %v565 = vperm.slane %v545, 0
        %v566 = vadd.f32 %v563, %v565
        %v567 = vsub.f32 %v566, %v558
        %v568 = vrcp.pop %v567
        %v569 = vmul.f32 %v567, %v568
        %v570 = vsub.f32 1.0, %v569
        %v571 = vmul.f32 %v568, %v570
        %v572 = vadd.f32 %v568, %v571
        %vm573 = vweird.f32 %v567
        %vm574 = vweird.f32 %v568
        %vm575 = vmor %vm573, %vm574
        %v576 = vsel %vm575, %v568, %v572
        %v577 = vand.u32 2147483647, %v567
        %vm578 = vcmp.eq.f32.partialorder %v577, 8.507059e+37
        %v579 = vand.u32 %v567, 2147483648
        %v580 = vor.u32 1.1754944e-38, %v579
        %v581 = vsel %vm578, %v580, %v576
        %v582 = vmul.f32 %v558, %v581
        %v583 = vsel %vm559, %v582, 0.0
        %vm584 = vcmask 654336
        %v585 = vsel %vm584, %v583, -inf
        %v586 = vrot.slane %v585, 4
        %v587 = vmax.f32 %v585, %v586
        %v588 = vrot.slane %v587, 2
        %v589 = vmax.f32 %v587, %v588
        %v590 = vrot.slane %v589, 1
        %v591 = vmax.f32 %v589, %v590
        %592 = vrot.lane.b32.xlu0 %v455, 126
        %v593 = vpop.permute.xlu0 %592
        %v595 = vadd.f32 %v455, %v593
        %v596 = vmul.f32 %v595, 0.5
        %598 = vset.pattern.permute.xlu0 0
        %599 = vperm.xlu0 %598, %v596
        %v600 = vpop.permute.xlu0 %599
        %v602 = vsub.f32 %v498, %v600
        %v604 = vperm.slane %v454, 0
        %v606 = vrcp.pop %v604
        %v607 = vmul.f32 %v604, %v606
        %v608 = vsub.f32 1.0, %v607
        %v609 = vmul.f32 %v606, %v608
        %v610 = vadd.f32 %v606, %v609
        %vm611 = vweird.f32 %v604
        %vm612 = vweird.f32 %v606
        %vm613 = vmor %vm611, %vm612
        %v614 = vsel %vm613, %v606, %v610
        %v615 = vand.u32 2147483647, %v604
        %vm616 = vcmp.eq.f32.partialorder %v615, 8.507059e+37
        %v617 = vand.u32 %v604, 2147483648
        %v618 = vor.u32 1.1754944e-38, %v617
        %v619 = vsel %vm616, %v618, %v614
        %v620 = vmul.f32 %v602, %v619
        %621 = vset.pattern.permute.xlu0 1
        %622 = vperm.xlu0 %621, %v596
        %v623 = vpop.permute.xlu0 %622
        %v625 = vsub.f32 %v505, %v623
        %v626 = vmul.f32 %v625, %v619
        %627 = vset.pattern.permute.xlu0 4
        %628 = vperm.xlu0 %627, %v455
        %v629 = vpop.permute.xlu0 %628
        %v631 = vsub.f32 %v620, %v629
        %v632 = vmul.f32 %v631, %v631
        %v633 = vsub.f32 0.0, %v632
        %v634 = vmul.f32 %v455, 2.0
        %v635 = vmul.f32 %v634, %v455
        %637 = vset.pattern.permute.xlu0 6
        %638 = vperm.xlu0 %637, %v635
        %v639 = vpop.permute.xlu0 %638
        %v641 = vrcp.pop %v639
        %v642 = vmul.f32 %v639, %v641
        %v643 = vsub.f32 1.0, %v642
        %v644 = vmul.f32 %v641, %v643
        %v645 = vadd.f32 %v641, %v644
        %vm646 = vweird.f32 %v639
        %vm647 = vweird.f32 %v641
        %vm648 = vmor %vm646, %vm647
        %v649 = vsel %vm648, %v641, %v645
        %v650 = vand.u32 2147483647, %v639
        %vm651 = vcmp.eq.f32.partialorder %v650, 8.507059e+37
        %v652 = vand.u32 %v639, 2147483648
        %v653 = vor.u32 1.1754944e-38, %v652
        %v654 = vsel %vm651, %v653, %v649
        %v655 = vmul.f32 %v633, %v654
        %656 = vset.pattern.permute.xlu0 5
        %657 = vperm.xlu0 %656, %v455
        %v658 = vpop.permute.xlu0 %657
        %v660 = vsub.f32 %v626, %v658
        %v661 = vmul.f32 %v660, %v660
        %662 = vset.pattern.permute.xlu0 7
        %663 = vperm.xlu0 %662, %v635
        %v664 = vpop.permute.xlu0 %663
        %v666 = vrcp.pop %v664
        %v667 = vmul.f32 %v664, %v666
        %v668 = vsub.f32 1.0, %v667
        %v669 = vmul.f32 %v666, %v668
        %v670 = vadd.f32 %v666, %v669
        %vm671 = vweird.f32 %v664
        %vm672 = vweird.f32 %v666
        %vm673 = vmor %vm671, %vm672
        %v674 = vsel %vm673, %v666, %v670
        %v675 = vand.u32 2147483647, %v664
        %vm676 = vcmp.eq.f32.partialorder %v675, 8.507059e+37
        %v677 = vand.u32 %v664, 2147483648
        %v678 = vor.u32 1.1754944e-38, %v677
        %v679 = vsel %vm676, %v678, %v674
        %v680 = vmul.f32 %v661, %v679
        %v681 = vsub.f32 %v655, %v680
        %v682 = vmul.f32 %v681, 1.442695
        %v683 = vpow.pop %v682
        %v684 = vrot.slane %v452, 6
        %v686 = vadd.f32 %v452, %v684
        %v687 = vmax.f32 %v686, 0.0
        %v689 = vrot.slane %v687, 1
        %v691 = vmul.f32 %v687, %v689
        %v692 = vadd.f32 %v515, %v504
        %v693 = vmax.f32 %v692, 0.0
        %v694 = vadd.f32 %v520, %v510
        %v695 = vmax.f32 %v694, 0.0
        %v696 = vmul.f32 %v693, %v695
        %v697 = vperm.slane %v452, 2
        %v698 = vmin.f32 %v697, %v515
        %v699 = vperm.slane %v452, 0
        %v700 = vmin.f32 %v699, %v504
        %v701 = vadd.f32 %v698, %v700
        %v702 = vmax.f32 %v701, 0.0
        %v703 = vperm.slane %v452, 3
        %v704 = vmin.f32 %v703, %v520
        %v705 = vperm.slane %v452, 1
        %v706 = vmin.f32 %v705, %v510
        %v707 = vadd.f32 %v704, %v706
        %v708 = vmax.f32 %v707, 0.0
        %v709 = vmul.f32 %v702, %v708
        %v710 = vperm.slane %v691, 2
        %v711 = vadd.f32 %v696, %v710
        %v712 = vsub.f32 %v711, %v709
        %v713 = vmax.f32 %v712, 1.1920929e-07
        %v714 = vrcp.pop %v713
        %v715 = vmul.f32 %v709, %v714
        %v716 = vmax.f32 %v697, %v515
        %v717 = vmax.f32 %v699, %v504
        %v718 = vadd.f32 %v716, %v717
        %v719 = vmax.f32 %v703, %v520
        %v720 = vmax.f32 %v705, %v510
        %v721 = vadd.f32 %v719, %v720
        %v722 = vmul.f32 %v718, %v721
        %v723 = vsub.f32 %v722, %v712
        %v724 = vmax.f32 %v722, 1.1920929e-07
        %v725 = vrcp.pop %v724
        %v726 = vmul.f32 %v723, %v725
        %v727 = vsub.f32 %v715, %v726
        %v728 = vsub.f32 1.0, %v727
        %v729 = vmul.f32 %v728, 5.0
        %v730 = vsub.f32 0.0, %v729
        %v731 = vmul.f32 %v730, 1.442695
        %v732 = vpow.pop %v731
        %v733 = vmul.f32 %v497, %v732
        %v734 = vmul.f32 %v733, 3.0
        %v735 = vmul.f32 %v734, 1.442695
        %v736 = vpow.pop %v735
        %v737 = vmul.f32 %v736, %v683
        %v738 = vmul.f32 %v737, %v526
        %v739 = vsel %vm584, %v738, 0.0
        %740 = vadd.xlane.f32.xlu0 %v739
        %v741 = vpop.xlane.xlu0 %740
        %v742 = vmax.f32 %v741, 1e-12
        %v743 = vrcp.pop %v742
        %v744 = vmul.f32 %v738, %v743
        %v745 = vmul.f32 %v744, %v733
        %v746 = vsel %vm584, %v745, 0.0
        %747 = vadd.xlane.f32.xlu0 %v746
        %v748 = vpop.xlane.xlu0 %747
        %v749 = vlog2.pop %v748
        %v750 = vmul.f32 %v749, 0.6931472
        %v751 = vmax.f32 %v750, -100.0
        %v752 = vsub.f32 0.0, %v751
        %vm753 = vcmask 7168
        %754 = vst.msk [vmem:[%s443] sm:$0xff] %vm753, %v752
        %v755 = vmul.f32 %v683, %v526
        %v756 = vsel %vm584, %v755, 0.0
        %757 = vadd.xlane.f32.xlu0 %v756
        %v758 = vpop.xlane.xlu0 %757
        %v759 = vrot.slane %v758, 4
        %v760 = vadd.f32 %v758, %v759
        %v761 = vrot.slane %v760, 2
        %v762 = vadd.f32 %v760, %v761
        %v763 = vrot.slane %v762, 1
        %v764 = vadd.f32 %v762, %v763
        %s765 = vtos %v764
        %v766 = vstv %s765
        %vm767 = vcmask 0
        %768 = vst.msk [vmem:[%s446] sm:$0x1] %vm767, %v766
        %v769 = vsub.f32 1.0, %v591
        %v770 = vmax.f32 %v769, 1e-12
        %v771 = vrcp.pop %v770
        %vm772 = vcmp.gt.f32.partialorder %v526, 0.0
        %v773 = vsel %vm772, %v771, 1e+30
        %v774 = vsel %vm584, %v773, inf
        %775 = vmin.xlane.f32.xlu0 %v774
        %v776 = vpop.xlane.xlu0 %775
        %v777 = vsel %vm772, %v771, -1e+30
        %v778 = vsel %vm584, %v777, -inf
        %779 = vmax.xlane.f32.xlu0 %v778
        %v780 = vpop.xlane.xlu0 %779
        %v781 = vsub.f32 %v771, %v776
        %v782 = vadd.f32 %v781, 1e-12
        %v783 = vsub.f32 %v780, %v776
        %v784 = vadd.f32 %v783, 1e-12
        %v785 = vrcp.pop %v784
        %v786 = vmul.f32 %v784, %v785
        %v787 = vsub.f32 1.0, %v786
        %v788 = vmul.f32 %v785, %v787
        %v789 = vadd.f32 %v785, %v788
        %vm790 = vweird.f32 %v784
        %vm791 = vweird.f32 %v785
        %vm792 = vmor %vm790, %vm791
        %v793 = vsel %vm792, %v785, %v789
        %v794 = vand.u32 2147483647, %v784
        %vm795 = vcmp.eq.f32.partialorder %v794, 8.507059e+37
        %v796 = vand.u32 %v784, 2147483648
        %v797 = vor.u32 1.1754944e-38, %v796
        %v798 = vsel %vm795, %v797, %v793
        %v799 = vmul.f32 %v782, %v798
        %v800 = vsel %vm772, %v799, 0.0
        %801 = vrot.lane.b32.xlu0 %v455, 120
        %v802 = vpop.permute.xlu0 %801
        %vm803 = vcmask 64512
        %v804 = vsel %vm803, %v802, 0
        %806 = vmatpush.msra.mxu0 0.0
        %807 = vmatpush.msra.mxu0 0.0
        %808 = vmatpush.msra.mxu0 0.0
        %809 = vmatpush.msra.mxu0 0.0
        %810 = vmatpush.msra.mxu0 0.0
        %811 = vmatpush.msra.mxu0 0.0
        %812 = vmatpush.msra.mxu0 0.0
        %813 = vmatpush.msra.mxu0 0.0
        %814 = vmatpush.msra.mxu0 0.0
        %815 = vmatpush.msra.mxu0 0.0
        %816 = vmatpush.msra.mxu0 0.0
        %817 = vmatpush.msra.mxu0 0.0
        %818 = vmatpush.msra.mxu0 0.0
        %819 = vmatpush.msra.mxu0 0.0
        %820 = vmatpush.msra.mxu0 0.0
        %821 = vmatpush.msra.mxu0 %v526
        %822 = vmatmul.f32.gmra.mxu0 %v804
        %v823 = vpop.f32.mrf.mxu0
        %v824 = vadd.f32 0.0, %v823
        %825 = vdwg.mxu0
        %vm826 = vcmp.le.f32.partialorder %v824, 0.0
        %v827 = vsel %vm826, 1, 0
        %v828 = vcvt.s32.f32 %v827
        %v829 = vmul.f32 %v526, %v828
        %v830 = vsub.f32 1.0, %v800
        %v831 = vmul.f32 %v497, %v830
        %v832 = vmul.f32 %v831, %v831
        %v833 = vsub.f32 1.0, %v831
        %v834 = vlog2.pop %v833
        %v835 = vmul.f32 %v834, 0.6931472
        %v836 = vmax.f32 %v835, -100.0
        %v837 = vsub.f32 0.0, %v836
        %v838 = vmul.f32 %v832, %v837
        %v839 = vmul.f32 %v497, %v497
        %v840 = vsub.f32 1.0, %v497
        %v841 = vlog2.pop %v840
        %v842 = vmul.f32 %v841, 0.6931472
        %v843 = vmax.f32 %v842, -100.0
        %v844 = vsub.f32 0.0, %v843
        %v845 = vmul.f32 %v839, %v844
        %v846 = vsub.f32 %v838, %v845
        %v847 = vmul.f32 %v846, %v829
        %v848 = vsel %vm584, %v847, 0.0
        %849 = vadd.xlane.f32.xlu0 %v848
        %v850 = vpop.xlane.xlu0 %849
        %v851 = vrot.slane %v850, 4
        %v852 = vadd.f32 %v850, %v851
        %v853 = vrot.slane %v852, 2
        %v854 = vadd.f32 %v852, %v853
        %v855 = vrot.slane %v854, 1
        %v856 = vadd.f32 %v854, %v855
        %s857 = vtos %v856
        %v858 = vstv %s857
        %859 = vst.msk [vmem:[%s449] sm:$0x1] %vm767, %v858
        %p860 = scmp.lt.s32.totalorder %s29, 1
        %s861 = scalar_select %p860, %s29, 1
        %s862 = smul.addr %s861, 8
        %s863 = scalar_lea.vmem %s6, %s862
        %p864 = scmp.lt.s32.totalorder %s29, 1
        %s865 = scalar_select %p864, %s29, 1
        %s866 = scalar_lea.vmem %s7, %s865
        %p867 = scmp.lt.s32.totalorder %s29, 1
        %s868 = scalar_select %p867, %s29, 1
        %s869 = scalar_lea.vmem %s8, %s868
        // Predicated region
        $region61: #{tpu_custom_call.1} parent=43 // pred_check
          %p870 = pneg %p193
        $region62: #{tpu_custom_call.1} parent=43 // pred_check_branch
          %872 = sbr.rel (%p870) target = $region64
        $region63: #{tpu_custom_call.1} parent=43 // pred_region
          _
        $region64: #{tpu_custom_call.1} parent=43 // pred_fallthru
          _
        // Predicated region
        $region65: #{tpu_custom_call.1} parent=43 // pred_check
          %p873 = pneg %p219
        $region66: #{tpu_custom_call.1} parent=43 // pred_check_branch
          %875 = sbr.rel (%p873) target = $region68
        $region67: #{tpu_custom_call.1} parent=43 // pred_region
          _
        $region68: #{tpu_custom_call.1} parent=43 // pred_fallthru
          _
        // Predicated region
        $region69: #{tpu_custom_call.1} parent=43 // pred_check
          %p876 = pneg %p245
        $region70: #{tpu_custom_call.1} parent=43 // pred_check_branch
          %878 = sbr.rel (%p876) target = $region72
        $region71: #{tpu_custom_call.1} parent=43 // pred_region
          _
        $region72: #{tpu_custom_call.1} parent=43 // pred_fallthru
          _
      $region44: #{tpu_custom_call.1} parent=5 // pred_fallthru
        _
      %p879 = scmp.le.s32.totalorder 2, %s24
      // Predicated region
      $region73: #{tpu_custom_call.1} parent=5 // pred_check
        %p880 = pneg %p879
      $region74: #{tpu_custom_call.1} parent=5 // pred_check_branch
        %882 = sbr.rel (%p880) target = $region76
      $region75: #{tpu_custom_call.1} parent=5 // pred_region
        %s883 = ssub.s32 %s24, 2
        // Predicated region
        $region77: #{tpu_custom_call.1} parent=75 // pred_check
          %p884 = pneg %p199
        $region78: #{tpu_custom_call.1} parent=75 // pred_check_branch
          %886 = sbr.rel (%p884) target = $region80
        $region79: #{tpu_custom_call.1} parent=75 // pred_region
          %p887 = scmp.lt.s32.totalorder %s30, 1
          %s888 = scalar_select %p887, %s30, 1
          %s889 = smul.addr %s888, 8
          %s890 = scalar_lea.vmem %s6, %s889
        $region80: #{tpu_custom_call.1} parent=75 // pred_fallthru
          _
        // Predicated region
        $region81: #{tpu_custom_call.1} parent=75 // pred_check
          %p891 = pneg %p225
        $region82: #{tpu_custom_call.1} parent=75 // pred_check_branch
          %893 = sbr.rel (%p891) target = $region84
        $region83: #{tpu_custom_call.1} parent=75 // pred_region
          %p894 = scmp.lt.s32.totalorder %s30, 1
          %s895 = scalar_select %p894, %s30, 1
          %s896 = scalar_lea.vmem %s7, %s895
        $region84: #{tpu_custom_call.1} parent=75 // pred_fallthru
          _
        // Predicated region
        $region85: #{tpu_custom_call.1} parent=75 // pred_check
          %p897 = pneg %p251
        $region86: #{tpu_custom_call.1} parent=75 // pred_check_branch
          %899 = sbr.rel (%p897) target = $region88
        $region87: #{tpu_custom_call.1} parent=75 // pred_region
          %p900 = scmp.lt.s32.totalorder %s30, 1
          %s901 = scalar_select %p900, %s30, 1
          %s902 = scalar_lea.vmem %s8, %s901
        $region88: #{tpu_custom_call.1} parent=75 // pred_fallthru
          _
      $region76: #{tpu_custom_call.1} parent=5 // pred_fallthru
        _
    $region6: #{tpu_custom_call.1} parent=1 // loop_footer
      %s28 = sadd.s32 1, %s24
    $region7: #{tpu_custom_call.1} parent=1 // loop_footer_branch
      %23 = sbr.rel target = $region3
    $region8: #{tpu_custom_call.1} parent=1 // loop_exit
      _
    %903 = vsyncpa [#allocation3], 1
    %s904 = scalar_lea.sflag [#allocation3], 1
    %905 = vsyncpa %s904, 1
    %906 = vsyncpa [#allocation5], 1
    %s907 = scalar_lea.sflag [#allocation5], 1
    %908 = vsyncpa %s907, 1
    %909 = vsyncpa [#allocation8], 1
    %s910 = scalar_lea.sflag [#allocation8], 1
    %911 = vsyncpa %s910, 1

</llo_original>
